<compile_context>
chip_gen: v7x
topology: tpu7x:2x2x1
jax: 0.10.0
libtpu: 0.0.40
codegen_flags: <defaults>
</compile_context>

<pallas_src>
import math

import jax
import jax.numpy as jnp
from jax.experimental import pallas as pl
from jax.experimental.pallas import tpu as pltpu

LN_EPS = 1e-12  # BERT LayerNorm epsilon


# --------------------------------------------------------------------------- #
# Kernel
# --------------------------------------------------------------------------- #
def rsan_kernel(fact_ref, label_ref, gamma_ref, beta_ref, out_ref):
    # fact_ref : (Bt, S, H)   label_ref : (Bt, L, H)   (f32 or bf16)
    # gamma_ref/beta_ref : (1, H) f32     out_ref : (Bt, 2, H) f32
    f32 = jnp.float32
    f_in = fact_ref[...]
    l_in = label_ref[...]
    Bt, S, H = f_in.shape
    L = l_in.shape[1]
    use_bf16_mxu = f_in.dtype == jnp.bfloat16

    # Residual / softmax / LayerNorm math stays f32 (v5e has no bf16 VPU/EUP).
    f = f_in.astype(f32)
    lab = l_in.astype(f32)
    # MXU operands: reuse the raw bf16 loads when inputs arrive in bf16.
    f_mm = f_in if use_bf16_mxu else f
    lab_mm = l_in if use_bf16_mxu else lab

    scale = 1.0 / math.sqrt(float(H))

    def dual_softmax(m):
        """Shared-exp row (lane) and column (sublane) softmax of m."""
        gmax = jnp.max(jnp.max(m, axis=-1, keepdims=True), axis=-2,
                       keepdims=True)                       # per-example max
        e = jnp.exp(m - gmax)                               # one exp pass
        row = e * pl.reciprocal(jnp.sum(e, axis=-1, keepdims=True), approx=True)
        col = e * pl.reciprocal(jnp.sum(e, axis=-2, keepdims=True), approx=True)
        return row, col

    if S >= L:
        # Larger axis (S) lane-dense: m[b, l, s] = <label_l, fact_s>.
        m = jnp.einsum("blh,bsh->bls", lab_mm, f_mm,
                       preferred_element_type=f32) * scale          # (Bt,L,S)
        a_l2f, a_f2l = dual_softmax(m)   # l2f: softmax over S, f2l: over L
        if use_bf16_mxu:
            a_l2f = a_l2f.astype(jnp.bfloat16)
            a_f2l = a_f2l.astype(jnp.bfloat16)
        # Transpose-free contractions (trans-LHS handled by the MXU).
        f_new = f + jnp.einsum("bls,blh->bsh", a_f2l, lab_mm,
                               preferred_element_type=f32)           # (Bt,S,H)
        l_new = lab + jnp.einsum("bls,bsh->blh", a_l2f, f_mm,
                                 preferred_element_type=f32)         # (Bt,L,H)
    else:
        # Larger axis (L) lane-dense: m[b, s, l] = <fact_s, label_l>.
        m = jnp.einsum("bsh,blh->bsl", f_mm, lab_mm,
                       preferred_element_type=f32) * scale           # (Bt,S,L)
        a_f2l, a_l2f = dual_softmax(m)   # f2l: softmax over L, l2f: over S
        if use_bf16_mxu:
            a_f2l = a_f2l.astype(jnp.bfloat16)
            a_l2f = a_l2f.astype(jnp.bfloat16)
        f_new = f + jnp.einsum("bsl,blh->bsh", a_f2l, lab_mm,
                               preferred_element_type=f32)
        l_new = lab + jnp.einsum("bsl,bsh->blh", a_l2f, f_mm,
                                 preferred_element_type=f32)

    # --- LayerNorm (affine folded in after the seq mean) --------------------
    inv_h = 1.0 / float(H)

    def normalize(x):
        mu = jnp.sum(x, axis=-1, keepdims=True) * inv_h
        xc = x - mu
        var = jnp.sum(xc * xc, axis=-1, keepdims=True) * inv_h
        return xc * jax.lax.rsqrt(var + LN_EPS)

    f_mean = jnp.sum(normalize(f_new), axis=1, keepdims=True) * (1.0 / float(S))
    l_mean = jnp.sum(normalize(l_new), axis=1, keepdims=True) * (1.0 / float(L))

    gamma = gamma_ref[...]    # (1, H) -> broadcasts against (Bt, 2, H)
    beta = beta_ref[...]
    pooled = jnp.concatenate([f_mean, l_mean], axis=1)        # (Bt, 2, H)
    out_ref[...] = pooled * gamma + beta                       # single store


# --------------------------------------------------------------------------- #
# Tiling / VMEM heuristics
# --------------------------------------------------------------------------- #
def _num_tensorcores():
    """TensorCores per chip (v4/v5p/v7x have 2; v5e/v6e have 1)."""
    try:
        kind = jax.devices()[0].device_kind.lower()
    except Exception:
        return 1
    return 2 if any(t in kind for t in ("v7", "v4", "v5p")) else 1


def _vmem_budget():
    """(per-step working-set budget, vmem_limit_bytes) — generation aware."""
    phys = 64 << 20  # conservative default (v7x per-TC VMEM) if the query fails
    try:
        info = pltpu.get_tpu_info()
        phys = int(getattr(info, "vmem_capacity_bytes", phys))
    except Exception:
        pass
    budget = min(phys // 3, 40 << 20)          # tile working set
    limit = int(min(phys * 3 // 4, budget * 3))  # scoped-VMEM limit to request
    return int(budget), int(limit)


def _pick_block_b(B, S, L, H, in_itemsize, num_tc, budget):
    """Batch-tile size: budgets IO *and* in-kernel intermediates, prefers
    divisors of B (no pad copy) and core-count-aligned grid lengths."""
    # f32 residual copies + f_new/l_new (+ raw loads) per example:
    work = (S + L) * H * (8 + in_itemsize)
    # score-matrix intermediates (m, e, two attention maps), f32-counted:
    work += 16 * S * L
    # double-buffered pipelined IO:
    io = 2 * (S + L) * H * in_itemsize + 2 * 2 * H * 4
    per_example = work + io
    bt_max = int(max(1, min(B, budget // per_example)))

    def steps_ok(bt):
        steps = -(-B // bt)
        return num_tc == 1 or B < num_tc or steps % num_tc == 0

    # 1) largest divisor of B within budget with a core-aligned step count.
    for bt in range(bt_max, 0, -1):
        if B % bt == 0 and steps_ok(bt) and 2 * bt >= bt_max:
            return bt
    # 2) largest divisor of B within budget (drop the step-count constraint).
    for bt in range(bt_max, 0, -1):
        if B % bt == 0 and 2 * bt >= bt_max:
            return bt
    # 3) accept padding; round the grid length to a multiple of the core count.
    steps = -(-B // bt_max)
    if num_tc > 1 and B >= num_tc:
        steps = -(-steps // num_tc) * num_tc
    return int(max(1, -(-B // steps)))


# --------------------------------------------------------------------------- #
# Wrapper
# --------------------------------------------------------------------------- #
def rsan_forward(fact, label, gamma, beta, block_b=None):
    """fact: (B, S, H), label: (B, L, H), gamma/beta: (H,) -> (B, 2H) f32."""
    B, S, H = fact.shape
    _, L, _ = label.shape

    # bf16 DMA only when H is MXU-scale; tiny-H workloads stay f32 on the VPU.
    use_bf16 = H >= 128
    in_dtype = jnp.bfloat16 if use_bf16 else jnp.float32
    fact = fact.astype(in_dtype)
    label = label.astype(in_dtype)

    num_tc = _num_tensorcores()
    budget, vmem_limit = _vmem_budget()
    itemsize = jnp.dtype(in_dtype).itemsize

    Bt = int(block_b) if block_b is not None else _pick_block_b(
        B, S, L, H, itemsize, num_tc, budget)
    num_blocks = int(pl.cdiv(B, Bt))
    Bp = num_blocks * Bt
    if Bp != B:  # only reached when no acceptable divisor of B exists
        pad = Bp - B
        fact = jnp.pad(fact, ((0, pad), (0, 0), (0, 0)))
        label = jnp.pad(label, ((0, pad), (0, 0), (0, 0)))

    gamma2 = gamma.reshape(1, H).astype(jnp.float32)
    beta2 = beta.reshape(1, H).astype(jnp.float32)

    out = pl.pallas_call(
        rsan_kernel,
        out_shape=jax.ShapeDtypeStruct((Bp, 2, H), jnp.float32),
        grid_spec=pltpu.PrefetchScalarGridSpec(
            num_scalar_prefetch=0,
            grid=(num_blocks,),
            in_specs=[
                pl.BlockSpec((Bt, S, H), lambda b: (b, 0, 0)),
                pl.BlockSpec((Bt, L, H), lambda b: (b, 0, 0)),
                # constant block index -> pipeline keeps gamma/beta resident
                pl.BlockSpec((1, H), lambda b: (0, 0)),
                pl.BlockSpec((1, H), lambda b: (0, 0)),
            ],
            out_specs=pl.BlockSpec((Bt, 2, H), lambda b: (b, 0, 0)),
        ),
        compiler_params=pltpu.CompilerParams(
            dimension_semantics=("parallel",),
            vmem_limit_bytes=vmem_limit),
    )(fact, label, gamma2, beta2)

    # lane-dense kernel output -> (B, 2H) concat is a free wrapper reshape.
    return out[:B].reshape(B, 2 * H)


# --------------------------------------------------------------------------- #
# Plain-JAX reference (f32) for correctness checking
# --------------------------------------------------------------------------- #
def rsan_reference(fact, label, gamma, beta):
    f = fact.astype(jnp.float32)
    lab = label.astype(jnp.float32)
    h = f.shape[-1]
    m = jnp.einsum("bsh,blh->bsl", f, lab) / math.sqrt(float(h))
    a_f2l = jax.nn.softmax(m, axis=-1)
    a_l2f = jax.nn.softmax(jnp.swapaxes(m, 1, 2), axis=-1)
    f_new = f + jnp.einsum("bsl,blh->bsh", a_f2l, lab)
    l_new = lab + jnp.einsum("bls,bsh->blh", a_l2f, f)

    def ln(x):
        mu = jnp.mean(x, axis=-1, keepdims=True)
        var = jnp.mean((x - mu) ** 2, axis=-1, keepdims=True)
        return (x - mu) / jnp.sqrt(var + LN_EPS) * gamma + beta

    f_out = jnp.mean(ln(f_new), axis=1)
    l_out = jnp.mean(ln(l_new), axis=1)
    return jnp.concatenate([f_out, l_out], axis=-1)


if __name__ == "__main__":
    # Small shapes consistent with the module: B=batch, S=opt.sen_len (fact
    # sequence), L=number of label tokens, H=BERT hidden size (scaled down).
    # S > L exercises the lane-dense-S score orientation; B=6 lets the divisor
    # logic pick a pad-free tiling on both 1-TC and 2-TC chips.
    B, S, L, H = 6, 8, 4, 32

    key = jax.random.PRNGKey(0)
    k_fact, k_label = jax.random.split(key)
    fact = jax.random.normal(k_fact, (B, S, H), dtype=jnp.float32)
    label = jax.random.normal(k_label, (B, L, H), dtype=jnp.float32)

    # Deterministic LayerNorm parameters (shared across both streams, as in
    # the PyTorch module which reuses self.norm).
    gamma = 1.0 + 0.01 * jnp.arange(H, dtype=jnp.float32)
    beta = 0.001 * jnp.arange(H, dtype=jnp.float32)

    out = rsan_forward(fact, label, gamma, beta)
    out = jax.block_until_ready(out)

    ref = rsan_reference(fact, label, gamma, beta)
    assert out.shape == (B, 2 * H), out.shape
    # approx softmax reciprocal (and bf16 MXU operands at large H) vs an f32
    # reference: compare at ~1e-2 tolerance.
    assert jnp.allclose(out, ref, atol=1e-2, rtol=1e-2), (
        float(jnp.max(jnp.abs(out - ref))))

    print("KERNEL_OK")
</pallas_src>

<mosaic_0001>
module attributes {stable_mosaic.version = 11 : i64} {
  func.func @rsan_kernel(%arg0: i32, %arg1: memref<6x8x32xf32, #tpu.memory_space<vmem>>, %arg2: memref<6x4x32xf32, #tpu.memory_space<vmem>>, %arg3: memref<1x32xf32, #tpu.memory_space<vmem>>, %arg4: memref<1x32xf32, #tpu.memory_space<vmem>>, %arg5: memref<6x2x32xf32, #tpu.memory_space<vmem>>) attributes {dimension_semantics = [#tpu.dimension_semantics<parallel>], iteration_bounds = array<i64: 1>, scalar_prefetch = 0 : i64, scratch_operands = 0 : i64, tpu.core_type = #tpu.core_type<tc>, window_params = [{transform_indices = @transform_0, window_bounds = array<i64: 6, 8, 32>}, {transform_indices = @transform_1, window_bounds = array<i64: 6, 4, 32>}, {pipeline_mode = #tpu.pipeline_mode<synchronous>, transform_indices = @transform_2, window_bounds = array<i64: 1, 32>}, {pipeline_mode = #tpu.pipeline_mode<synchronous>, transform_indices = @transform_3, window_bounds = array<i64: 1, 32>}, {transform_indices = @transform_4, window_bounds = array<i64: 6, 2, 32>}]} {
    %c0 = arith.constant 0 : index
    %c0_0 = arith.constant 0 : index
    %c0_1 = arith.constant 0 : index
    %0 = vector.load %arg1[%c0, %c0_0, %c0_1] : memref<6x8x32xf32, #tpu.memory_space<vmem>>, vector<6x8x32xf32>
    %c0_2 = arith.constant 0 : index
    %c0_3 = arith.constant 0 : index
    %c0_4 = arith.constant 0 : index
    %1 = vector.load %arg2[%c0_2, %c0_3, %c0_4] : memref<6x4x32xf32, #tpu.memory_space<vmem>>, vector<6x4x32xf32>
    "tpu.trace_start"() <{level = 10 : i32, message = "blh,bsh->bls"}> : () -> ()
    %cst = arith.constant dense<0.000000e+00> : vector<6x4x8xf32>
    %2 = tpu.matmul %1, %0, %cst {dimension_numbers = #tpu.dot_dimension_numbers<[2], [2], [1], [1], [0, 0, 0, 1, 1, 1], [0], [0]>} : vector<6x4x32xf32>, vector<6x8x32xf32>, vector<6x4x8xf32> -> vector<6x4x8xf32>
    "tpu.trace_stop"() : () -> ()
    %cst_5 = arith.constant 0.176776692 : f32
    %3 = vector.broadcast %cst_5 : f32 to vector<6x4x8xf32>
    %4 = arith.mulf %2, %3 : vector<6x4x8xf32>
    %cst_6 = arith.constant dense<0xFF800000> : vector<6x4xf32>
    %5 = vector.multi_reduction <maximumf>, %4, %cst_6 [2] : vector<6x4x8xf32> to vector<6x4xf32>
    %6 = vector.shape_cast %5 : vector<6x4xf32> to vector<6x4x1xf32>
    %cst_7 = arith.constant dense<0xFF800000> : vector<6x1xf32>
    %7 = vector.multi_reduction <maximumf>, %6, %cst_7 [1] : vector<6x4x1xf32> to vector<6x1xf32>
    %8 = vector.shape_cast %7 : vector<6x1xf32> to vector<6x1x1xf32>
    %9 = vector.broadcast %8 : vector<6x1x1xf32> to vector<6x4x8xf32>
    %10 = arith.subf %4, %9 : vector<6x4x8xf32>
    %11 = math.exp %10 : vector<6x4x8xf32>
    %cst_8 = arith.constant dense<0.000000e+00> : vector<6x4xf32>
    %12 = vector.multi_reduction <add>, %11, %cst_8 [2] : vector<6x4x8xf32> to vector<6x4xf32>
    %13 = vector.shape_cast %12 : vector<6x4xf32> to vector<6x4x1xf32>
    %14 = tpu.reciprocal %13 {approx = true} : vector<6x4x1xf32> -> vector<6x4x1xf32>
    %15 = vector.broadcast %14 : vector<6x4x1xf32> to vector<6x4x8xf32>
    %16 = arith.mulf %11, %15 : vector<6x4x8xf32>
    %cst_9 = arith.constant dense<0.000000e+00> : vector<6x8xf32>
    %17 = vector.multi_reduction <add>, %11, %cst_9 [1] : vector<6x4x8xf32> to vector<6x8xf32>
    %18 = vector.shape_cast %17 : vector<6x8xf32> to vector<6x1x8xf32>
    %19 = tpu.reciprocal %18 {approx = true} : vector<6x1x8xf32> -> vector<6x1x8xf32>
    %20 = vector.broadcast %19 : vector<6x1x8xf32> to vector<6x4x8xf32>
    %21 = arith.mulf %11, %20 : vector<6x4x8xf32>
    "tpu.trace_start"() <{level = 10 : i32, message = "bls,blh->bsh"}> : () -> ()
    %cst_10 = arith.constant dense<0.000000e+00> : vector<6x8x32xf32>
    %22 = tpu.matmul %21, %1, %cst_10 {dimension_numbers = #tpu.dot_dimension_numbers<[1], [1], [2], [2], [0, 0, 0, 2, 1, 2], [0], [0]>} : vector<6x4x8xf32>, vector<6x4x32xf32>, vector<6x8x32xf32> -> vector<6x8x32xf32>
    "tpu.trace_stop"() : () -> ()
    %23 = arith.addf %0, %22 : vector<6x8x32xf32>
    "tpu.trace_start"() <{level = 10 : i32, message = "bls,bsh->blh"}> : () -> ()
    %cst_11 = arith.constant dense<0.000000e+00> : vector<6x4x32xf32>
    %24 = tpu.matmul %16, %0, %cst_11 {dimension_numbers = #tpu.dot_dimension_numbers<[2], [1], [1], [2], [0, 0, 0, 1, 1, 2], [0], [0]>} : vector<6x4x8xf32>, vector<6x8x32xf32>, vector<6x4x32xf32> -> vector<6x4x32xf32>
    "tpu.trace_stop"() : () -> ()
    %25 = arith.addf %1, %24 : vector<6x4x32xf32>
    %cst_12 = arith.constant dense<0.000000e+00> : vector<6x8xf32>
    %26 = vector.multi_reduction <add>, %23, %cst_12 [2] : vector<6x8x32xf32> to vector<6x8xf32>
    %27 = vector.shape_cast %26 : vector<6x8xf32> to vector<6x8x1xf32>
    %cst_13 = arith.constant 3.125000e-02 : f32
    %28 = vector.broadcast %cst_13 : f32 to vector<6x8x1xf32>
    %29 = arith.mulf %27, %28 : vector<6x8x1xf32>
    %30 = vector.broadcast %29 : vector<6x8x1xf32> to vector<6x8x32xf32>
    %31 = arith.subf %23, %30 : vector<6x8x32xf32>
    %32 = arith.mulf %31, %31 : vector<6x8x32xf32>
    %cst_14 = arith.constant dense<0.000000e+00> : vector<6x8xf32>
    %33 = vector.multi_reduction <add>, %32, %cst_14 [2] : vector<6x8x32xf32> to vector<6x8xf32>
    %34 = vector.shape_cast %33 : vector<6x8xf32> to vector<6x8x1xf32>
    %cst_15 = arith.constant 3.125000e-02 : f32
    %35 = vector.broadcast %cst_15 : f32 to vector<6x8x1xf32>
    %36 = arith.mulf %34, %35 : vector<6x8x1xf32>
    %cst_16 = arith.constant 9.99999996E-13 : f32
    %37 = vector.broadcast %cst_16 : f32 to vector<6x8x1xf32>
    %38 = arith.addf %36, %37 : vector<6x8x1xf32>
    %39 = math.rsqrt %38 : vector<6x8x1xf32>
    %40 = vector.broadcast %39 : vector<6x8x1xf32> to vector<6x8x32xf32>
    %41 = arith.mulf %31, %40 : vector<6x8x32xf32>
    %cst_17 = arith.constant dense<0.000000e+00> : vector<6x32xf32>
    %42 = vector.multi_reduction <add>, %41, %cst_17 [1] : vector<6x8x32xf32> to vector<6x32xf32>
    %43 = vector.shape_cast %42 : vector<6x32xf32> to vector<6x1x32xf32>
    %cst_18 = arith.constant 1.250000e-01 : f32
    %44 = vector.broadcast %cst_18 : f32 to vector<6x1x32xf32>
    %45 = arith.mulf %43, %44 : vector<6x1x32xf32>
    %cst_19 = arith.constant dense<0.000000e+00> : vector<6x4xf32>
    %46 = vector.multi_reduction <add>, %25, %cst_19 [2] : vector<6x4x32xf32> to vector<6x4xf32>
    %47 = vector.shape_cast %46 : vector<6x4xf32> to vector<6x4x1xf32>
    %cst_20 = arith.constant 3.125000e-02 : f32
    %48 = vector.broadcast %cst_20 : f32 to vector<6x4x1xf32>
    %49 = arith.mulf %47, %48 : vector<6x4x1xf32>
    %50 = vector.broadcast %49 : vector<6x4x1xf32> to vector<6x4x32xf32>
    %51 = arith.subf %25, %50 : vector<6x4x32xf32>
    %52 = arith.mulf %51, %51 : vector<6x4x32xf32>
    %cst_21 = arith.constant dense<0.000000e+00> : vector<6x4xf32>
    %53 = vector.multi_reduction <add>, %52, %cst_21 [2] : vector<6x4x32xf32> to vector<6x4xf32>
    %54 = vector.shape_cast %53 : vector<6x4xf32> to vector<6x4x1xf32>
    %cst_22 = arith.constant 3.125000e-02 : f32
    %55 = vector.broadcast %cst_22 : f32 to vector<6x4x1xf32>
    %56 = arith.mulf %54, %55 : vector<6x4x1xf32>
    %cst_23 = arith.constant 9.99999996E-13 : f32
    %57 = vector.broadcast %cst_23 : f32 to vector<6x4x1xf32>
    %58 = arith.addf %56, %57 : vector<6x4x1xf32>
    %59 = math.rsqrt %58 : vector<6x4x1xf32>
    %60 = vector.broadcast %59 : vector<6x4x1xf32> to vector<6x4x32xf32>
    %61 = arith.mulf %51, %60 : vector<6x4x32xf32>
    %cst_24 = arith.constant dense<0.000000e+00> : vector<6x32xf32>
    %62 = vector.multi_reduction <add>, %61, %cst_24 [1] : vector<6x4x32xf32> to vector<6x32xf32>
    %63 = vector.shape_cast %62 : vector<6x32xf32> to vector<6x1x32xf32>
    %cst_25 = arith.constant 2.500000e-01 : f32
    %64 = vector.broadcast %cst_25 : f32 to vector<6x1x32xf32>
    %65 = arith.mulf %63, %64 : vector<6x1x32xf32>
    %c0_26 = arith.constant 0 : index
    %c0_27 = arith.constant 0 : index
    %66 = vector.load %arg3[%c0_26, %c0_27] : memref<1x32xf32, #tpu.memory_space<vmem>>, vector<1x32xf32>
    %c0_28 = arith.constant 0 : index
    %c0_29 = arith.constant 0 : index
    %67 = vector.load %arg4[%c0_28, %c0_29] : memref<1x32xf32, #tpu.memory_space<vmem>>, vector<1x32xf32>
    %68 = tpu.concatenate %45, %65 in 1 : vector<6x1x32xf32>, vector<6x1x32xf32> -> vector<6x2x32xf32>
    %69 = vector.shape_cast %66 : vector<1x32xf32> to vector<1x1x32xf32>
    %70 = vector.broadcast %69 : vector<1x1x32xf32> to vector<6x2x32xf32>
    %71 = arith.mulf %68, %70 : vector<6x2x32xf32>
    %72 = vector.shape_cast %67 : vector<1x32xf32> to vector<1x1x32xf32>
    %73 = vector.broadcast %72 : vector<1x1x32xf32> to vector<6x2x32xf32>
    %74 = arith.addf %71, %73 : vector<6x2x32xf32>
    %c0_30 = arith.constant 0 : index
    %c0_31 = arith.constant 0 : index
    %c0_32 = arith.constant 0 : index
    %75 = vector.load %arg5[%c0_30, %c0_31, %c0_32] : memref<6x2x32xf32, #tpu.memory_space<vmem>>, vector<6x2x32xf32>
    tpu.vector_store %arg5[%c0_30, %c0_31, %c0_32], %74 {strides = array<i32>} : memref<6x2x32xf32, #tpu.memory_space<vmem>>, vector<6x2x32xf32>,
    return
  }
  func.func @transform_0(%arg0: i32) -> (i32, i32, i32) {
    %c0_i32 = arith.constant 0 : i32
    %c0_i32_0 = arith.constant 0 : i32
    %c0_i32_1 = arith.constant 0 : i32
    return %arg0, %c0_i32, %c0_i32_0 : i32, i32, i32
  }
  func.func @transform_1(%arg0: i32) -> (i32, i32, i32) {
    %c0_i32 = arith.constant 0 : i32
    %c0_i32_0 = arith.constant 0 : i32
    %c0_i32_1 = arith.constant 0 : i32
    return %arg0, %c0_i32, %c0_i32_0 : i32, i32, i32
  }
  func.func @transform_2(%arg0: i32) -> (i32, i32) {
    %c0_i32 = arith.constant 0 : i32
    %c0_i32_0 = arith.constant 0 : i32
    %c0_i32_1 = arith.constant 0 : i32
    return %c0_i32, %c0_i32_0 : i32, i32
  }
  func.func @transform_3(%arg0: i32) -> (i32, i32) {
    %c0_i32 = arith.constant 0 : i32
    %c0_i32_0 = arith.constant 0 : i32
    %c0_i32_1 = arith.constant 0 : i32
    return %c0_i32, %c0_i32_0 : i32, i32
  }
  func.func @transform_4(%arg0: i32) -> (i32, i32, i32) {
    %c0_i32 = arith.constant 0 : i32
    %c0_i32_0 = arith.constant 0 : i32
    %c0_i32_1 = arith.constant 0 : i32
    return %arg0, %c0_i32, %c0_i32_0 : i32, i32, i32
  }
}

</mosaic_0001>

<llo_original>
// kernel: tpu_custom_call.1
$region0: #{tpu_custom_call.1}
  #allocation0 [shape = 'u32[]', space=smem, size = 0x4, offset = 0x4, fixed_abs, tag = 'smem constant byte address 0x4 - core index']
  #allocation1 [shape = 'u32[144,128]{1,0:T(1,128)}', space=vmem, size = 0x12000, scoped, tag = 'internal scratch']
  %s0 = inlined_call_operand.hbm [shape: f32[6,8,32], index: 0, kind: input, shape index: {}]
  %s1 = inlined_call_operand.hbm [shape: f32[6,4,32], index: 1, kind: input, shape index: {}]
  %s2 = inlined_call_operand.vmem [shape: f32[1,32], index: 2, kind: input, shape index: {}]
  %s3 = inlined_call_operand.vmem [shape: f32[1,32], index: 3, kind: input, shape index: {}]
  %s4 = inlined_call_operand.hbm [shape: f32[6,2,32], index: 4, kind: output, shape index: {}]
  %s5 = sld [smem:[#allocation0]]
  $region34: #{tpu_custom_call.1} parent=0
    _
  %s7 = ssub.s32 1, %s5
  %s8 = scalar_select 0, %s7, %s5
  $region1: #{tpu_custom_call.1} parent=0
    #allocation2 [shape = 'u8[24576]{0}', space=vmem, size = 0x6000, scoped, tag = 'input window, operand 0, single buffered']
    #allocation3 [shape = 's32[1]{0}', space=sflag, size = 0x4, scoped, tag = 'scoped memory for tpu_custom_call.1']
    #allocation4 [shape = 's32[1]{0}', space=sflag, size = 0x4, scoped, tag = 'scoped memory for tpu_custom_call.1']
    #allocation5 [shape = 'u8[12288]{0}', space=vmem, size = 0x3000, scoped, tag = 'input window, operand 1, single buffered']
    #allocation6 [shape = 's32[1]{0}', space=sflag, size = 0x4, scoped, tag = 'scoped memory for tpu_custom_call.1']
    #allocation7 [shape = 'u8[6144]{0}', space=vmem, size = 0x1800, scoped, tag = 'output window, operand 0, single buffered']
    %9 = vsyncpa [#allocation3], 0
    %10 = vsyncpa [#allocation6], 0
    %11 = vsyncpa [#allocation4], 0
    // Predicated region
    $region2: #{tpu_custom_call.1} parent=1 // pred_check
      _
    $region3: #{tpu_custom_call.1} parent=1 // pred_check_branch
      %13 = sbr.rel (0) target = $region5
    $region4: #{tpu_custom_call.1} parent=1 // pred_region
      %s15 = ssub.s32 768, 768
      %16 = vsyncadd [#allocation3], %s15
      %s17 = sshll.u32 [#allocation2], 4
      %s18 = int_to_ptr.vmem [resolvable:$true] %s17
      %23 = dma.hbm_to_vmem [thread:$0]  %s0, 768, %s18, [#allocation3], 128, 128, 8
    $region5: #{tpu_custom_call.1} parent=1 // pred_fallthru
      _
    // Predicated region
    $region6: #{tpu_custom_call.1} parent=1 // pred_check
      _
    $region7: #{tpu_custom_call.1} parent=1 // pred_check_branch
      %25 = sbr.rel (0) target = $region9
    $region8: #{tpu_custom_call.1} parent=1 // pred_region
      %s27 = ssub.s32 384, 384
      %28 = vsyncadd [#allocation6], %s27
      %s29 = sshll.u32 [#allocation5], 4
      %s30 = int_to_ptr.vmem [resolvable:$true] %s29
      %35 = dma.hbm_to_vmem [thread:$0]  %s1, 384, %s30, [#allocation6], 64, 64, 4
    $region9: #{tpu_custom_call.1} parent=1 // pred_fallthru
      _
    // Predicated region
    $region10: #{tpu_custom_call.1} parent=1 // pred_check
      _
    $region11: #{tpu_custom_call.1} parent=1 // pred_check_branch
      %37 = sbr.rel (0) target = $region13
    $region12: #{tpu_custom_call.1} parent=1 // pred_region
      _
    $region13: #{tpu_custom_call.1} parent=1 // pred_fallthru
      _
    // Predicated region
    $region14: #{tpu_custom_call.1} parent=1 // pred_check
      _
    $region15: #{tpu_custom_call.1} parent=1 // pred_check_branch
      %39 = sbr.rel (0) target = $region17
    $region16: #{tpu_custom_call.1} parent=1 // pred_region
      _
    $region17: #{tpu_custom_call.1} parent=1 // pred_fallthru
      _
    // Predicated region
    $region18: #{tpu_custom_call.1} parent=1 // pred_check
      _
    $region19: #{tpu_custom_call.1} parent=1 // pred_check_branch
      %41 = sbr.rel (0) target = $region21
    $region20: #{tpu_custom_call.1} parent=1 // pred_region
      %42 = dma.done [#allocation3], 768
    $region21: #{tpu_custom_call.1} parent=1 // pred_fallthru
      _
    // Predicated region
    $region22: #{tpu_custom_call.1} parent=1 // pred_check
      _
    $region23: #{tpu_custom_call.1} parent=1 // pred_check_branch
      %44 = sbr.rel (0) target = $region25
    $region24: #{tpu_custom_call.1} parent=1 // pred_region
      %45 = dma.done [#allocation6], 384
    $region25: #{tpu_custom_call.1} parent=1 // pred_fallthru
      _
    %v46 = vld [vmem:[#allocation2] sm:$0xff]
    %v47 = vld [vmem:[#allocation2 + $0x8] sm:$0xff]
    %v48 = vld [vmem:[#allocation2 + $0x10] sm:$0xff]
    %v49 = vld [vmem:[#allocation2 + $0x18] sm:$0xff]
    %v50 = vld [vmem:[#allocation2 + $0x20] sm:$0xff]
    %v51 = vld [vmem:[#allocation2 + $0x28] sm:$0xff]
    %v52 = vld [vmem:[#allocation5] sm:$0xf]
    %v53 = vld [vmem:[#allocation5 + $0x4] sm:$0xf]
    %v54 = vld [vmem:[#allocation5 + $0x8] sm:$0xf]
    %v55 = vld [vmem:[#allocation5 + $0xc] sm:$0xf]
    %v56 = vld [vmem:[#allocation5 + $0x10] sm:$0xf]
    %v57 = vld [vmem:[#allocation5 + $0x14] sm:$0xf]
    %vm58 = vcmask 261120
    %v60 = vsel %vm58, %v52, 0
    %v63 = vsel %vm58, %v46, 0
    %65 = vmatprep.subr.mxu0 0.0
    %66 = vmatpush1.xpose.msra.mxu0 %v63
    %67 = vmatprep.subr.mxu0 0.0
    %68 = vmatpush1.xpose.msra.mxu0 0.0
    %69 = vmatprep.subr.mxu0 0.0
    %70 = vmatpush1.xpose.msra.mxu0 0.0
    %71 = vmatprep.subr.mxu0 0.0
    %72 = vmatpush1.xpose.msra.mxu0 0.0
    %73 = vmatprep.subr.mxu0 0.0
    %74 = vmatpush1.xpose.msra.mxu0 0.0
    %75 = vmatprep.subr.mxu0 0.0
    %76 = vmatpush1.xpose.msra.mxu0 0.0
    %77 = vmatprep.subr.mxu0 0.0
    %78 = vmatpush1.xpose.msra.mxu0 0.0
    %79 = vmatprep.subr.mxu0 0.0
    %80 = vmatpush1.xpose.msra.mxu0 0.0
    %81 = vmatprep.subr.mxu0 0.0
    %82 = vmatpush1.xpose.msra.mxu0 0.0
    %83 = vmatprep.subr.mxu0 0.0
    %84 = vmatpush1.xpose.msra.mxu0 0.0
    %85 = vmatprep.subr.mxu0 0.0
    %86 = vmatpush1.xpose.msra.mxu0 0.0
    %87 = vmatprep.subr.mxu0 0.0
    %88 = vmatpush1.xpose.msra.mxu0 0.0
    %89 = vmatprep.subr.mxu0 0.0
    %90 = vmatpush1.xpose.msra.mxu0 0.0
    %91 = vmatprep.subr.mxu0 0.0
    %92 = vmatpush1.xpose.msra.mxu0 0.0
    %93 = vmatprep.subr.mxu0 0.0
    %94 = vmatpush1.xpose.msra.mxu0 0.0
    %95 = vmatprep.subr.mxu0 0.0
    %96 = vmatpush1.xpose.msra.mxu0 0.0
    %97 = vmatprep.subr.mxu0 0.0
    %98 = vmatpush1.xpose.msra.mxu0 0.0
    %99 = vmatprep.subr.mxu0 0.0
    %100 = vmatpush1.xpose.msra.mxu0 0.0
    %101 = vmatprep.subr.mxu0 0.0
    %102 = vmatpush1.xpose.msra.mxu0 0.0
    %103 = vmatprep.subr.mxu0 0.0
    %104 = vmatpush1.xpose.msra.mxu0 0.0
    %105 = vmatprep.subr.mxu0 0.0
    %106 = vmatpush1.xpose.msra.mxu0 0.0
    %107 = vmatprep.subr.mxu0 0.0
    %108 = vmatpush1.xpose.msra.mxu0 0.0
    %109 = vmatprep.subr.mxu0 0.0
    %110 = vmatpush1.xpose.msra.mxu0 0.0
    %111 = vmatprep.subr.mxu0 0.0
    %112 = vmatpush1.xpose.msra.mxu0 0.0
    %113 = vmatprep.subr.mxu0 0.0
    %114 = vmatpush1.xpose.msra.mxu0 0.0
    %115 = vmatprep.subr.mxu0 0.0
    %116 = vmatpush1.xpose.msra.mxu0 0.0
    %117 = vmatprep.subr.mxu0 0.0
    %118 = vmatpush1.xpose.msra.mxu0 0.0
    %119 = vmatprep.subr.mxu0 0.0
    %120 = vmatpush1.xpose.msra.mxu0 0.0
    %121 = vmatprep.subr.mxu0 0.0
    %122 = vmatpush1.xpose.msra.mxu0 0.0
    %123 = vmatprep.subr.mxu0 0.0
    %124 = vmatpush1.xpose.msra.mxu0 0.0
    %125 = vmatprep.subr.mxu0 0.0
    %126 = vmatpush1.xpose.msra.mxu0 0.0
    %127 = vmatprep.subr.mxu0 0.0
    %128 = vmatpush1.xpose.msra.mxu0 0.0
    %129 = vmatprep.mubr.f32.mxu0 0.0
    %130 = vmatmul.mubr.f32.gmra.mrb[0].mxu0 %v60
    %v131 = vpop.f32.mrb[0].mxu0
    %v132 = vadd.f32 0.0, %v131
    %v133 = vpop.f32.mrb[0].mxu0
    %134 = vdwg.mxu0
    %v136 = vsel %vm58, %v53, 0
    %v139 = vsel %vm58, %v47, 0
    %141 = vmatprep.subr.mxu0 0.0
    %142 = vmatpush1.xpose.msra.mxu0 %v139
    %143 = vmatprep.subr.mxu0 0.0
    %144 = vmatpush1.xpose.msra.mxu0 0.0
    %145 = vmatprep.subr.mxu0 0.0
    %146 = vmatpush1.xpose.msra.mxu0 0.0
    %147 = vmatprep.subr.mxu0 0.0
    %148 = vmatpush1.xpose.msra.mxu0 0.0
    %149 = vmatprep.subr.mxu0 0.0
    %150 = vmatpush1.xpose.msra.mxu0 0.0
    %151 = vmatprep.subr.mxu0 0.0
    %152 = vmatpush1.xpose.msra.mxu0 0.0
    %153 = vmatprep.subr.mxu0 0.0
    %154 = vmatpush1.xpose.msra.mxu0 0.0
    %155 = vmatprep.subr.mxu0 0.0
    %156 = vmatpush1.xpose.msra.mxu0 0.0
    %157 = vmatprep.subr.mxu0 0.0
    %158 = vmatpush1.xpose.msra.mxu0 0.0
    %159 = vmatprep.subr.mxu0 0.0
    %160 = vmatpush1.xpose.msra.mxu0 0.0
    %161 = vmatprep.subr.mxu0 0.0
    %162 = vmatpush1.xpose.msra.mxu0 0.0
    %163 = vmatprep.subr.mxu0 0.0
    %164 = vmatpush1.xpose.msra.mxu0 0.0
    %165 = vmatprep.subr.mxu0 0.0
    %166 = vmatpush1.xpose.msra.mxu0 0.0
    %167 = vmatprep.subr.mxu0 0.0
    %168 = vmatpush1.xpose.msra.mxu0 0.0
    %169 = vmatprep.subr.mxu0 0.0
    %170 = vmatpush1.xpose.msra.mxu0 0.0
    %171 = vmatprep.subr.mxu0 0.0
    %172 = vmatpush1.xpose.msra.mxu0 0.0
    %173 = vmatprep.subr.mxu0 0.0
    %174 = vmatpush1.xpose.msra.mxu0 0.0
    %175 = vmatprep.subr.mxu0 0.0
    %176 = vmatpush1.xpose.msra.mxu0 0.0
    %177 = vmatprep.subr.mxu0 0.0
    %178 = vmatpush1.xpose.msra.mxu0 0.0
    %179 = vmatprep.subr.mxu0 0.0
    %180 = vmatpush1.xpose.msra.mxu0 0.0
    %181 = vmatprep.subr.mxu0 0.0
    %182 = vmatpush1.xpose.msra.mxu0 0.0
    %183 = vmatprep.subr.mxu0 0.0
    %184 = vmatpush1.xpose.msra.mxu0 0.0
    %185 = vmatprep.subr.mxu0 0.0
    %186 = vmatpush1.xpose.msra.mxu0 0.0
    %187 = vmatprep.subr.mxu0 0.0
    %188 = vmatpush1.xpose.msra.mxu0 0.0
    %189 = vmatprep.subr.mxu0 0.0
    %190 = vmatpush1.xpose.msra.mxu0 0.0
    %191 = vmatprep.subr.mxu0 0.0
    %192 = vmatpush1.xpose.msra.mxu0 0.0
    %193 = vmatprep.subr.mxu0 0.0
    %194 = vmatpush1.xpose.msra.mxu0 0.0
    %195 = vmatprep.subr.mxu0 0.0
    %196 = vmatpush1.xpose.msra.mxu0 0.0
    %197 = vmatprep.subr.mxu0 0.0
    %198 = vmatpush1.xpose.msra.mxu0 0.0
    %199 = vmatprep.subr.mxu0 0.0
    %200 = vmatpush1.xpose.msra.mxu0 0.0
    %201 = vmatprep.subr.mxu0 0.0
    %202 = vmatpush1.xpose.msra.mxu0 0.0
    %203 = vmatprep.subr.mxu0 0.0
    %204 = vmatpush1.xpose.msra.mxu0 0.0
    %205 = vmatprep.mubr.f32.mxu0 0.0
    %206 = vmatmul.mubr.f32.gmra.mrb[0].mxu0 %v136
    %v207 = vpop.f32.mrb[0].mxu0
    %v208 = vadd.f32 0.0, %v207
    %v209 = vpop.f32.mrb[0].mxu0
    %210 = vdwg.mxu0
    %v212 = vsel %vm58, %v54, 0
    %v215 = vsel %vm58, %v48, 0
    %217 = vmatprep.subr.mxu0 0.0
    %218 = vmatpush1.xpose.msra.mxu0 %v215
    %219 = vmatprep.subr.mxu0 0.0
    %220 = vmatpush1.xpose.msra.mxu0 0.0
    %221 = vmatprep.subr.mxu0 0.0
    %222 = vmatpush1.xpose.msra.mxu0 0.0
    %223 = vmatprep.subr.mxu0 0.0
    %224 = vmatpush1.xpose.msra.mxu0 0.0
    %225 = vmatprep.subr.mxu0 0.0
    %226 = vmatpush1.xpose.msra.mxu0 0.0
    %227 = vmatprep.subr.mxu0 0.0
    %228 = vmatpush1.xpose.msra.mxu0 0.0
    %229 = vmatprep.subr.mxu0 0.0
    %230 = vmatpush1.xpose.msra.mxu0 0.0
    %231 = vmatprep.subr.mxu0 0.0
    %232 = vmatpush1.xpose.msra.mxu0 0.0
    %233 = vmatprep.subr.mxu0 0.0
    %234 = vmatpush1.xpose.msra.mxu0 0.0
    %235 = vmatprep.subr.mxu0 0.0
    %236 = vmatpush1.xpose.msra.mxu0 0.0
    %237 = vmatprep.subr.mxu0 0.0
    %238 = vmatpush1.xpose.msra.mxu0 0.0
    %239 = vmatprep.subr.mxu0 0.0
    %240 = vmatpush1.xpose.msra.mxu0 0.0
    %241 = vmatprep.subr.mxu0 0.0
    %242 = vmatpush1.xpose.msra.mxu0 0.0
    %243 = vmatprep.subr.mxu0 0.0
    %244 = vmatpush1.xpose.msra.mxu0 0.0
    %245 = vmatprep.subr.mxu0 0.0
    %246 = vmatpush1.xpose.msra.mxu0 0.0
    %247 = vmatprep.subr.mxu0 0.0
    %248 = vmatpush1.xpose.msra.mxu0 0.0
    %249 = vmatprep.subr.mxu0 0.0
    %250 = vmatpush1.xpose.msra.mxu0 0.0
    %251 = vmatprep.subr.mxu0 0.0
    %252 = vmatpush1.xpose.msra.mxu0 0.0
    %253 = vmatprep.subr.mxu0 0.0
    %254 = vmatpush1.xpose.msra.mxu0 0.0
    %255 = vmatprep.subr.mxu0 0.0
    %256 = vmatpush1.xpose.msra.mxu0 0.0
    %257 = vmatprep.subr.mxu0 0.0
    %258 = vmatpush1.xpose.msra.mxu0 0.0
    %259 = vmatprep.subr.mxu0 0.0
    %260 = vmatpush1.xpose.msra.mxu0 0.0
    %261 = vmatprep.subr.mxu0 0.0
    %262 = vmatpush1.xpose.msra.mxu0 0.0
    %263 = vmatprep.subr.mxu0 0.0
    %264 = vmatpush1.xpose.msra.mxu0 0.0
    %265 = vmatprep.subr.mxu0 0.0
    %266 = vmatpush1.xpose.msra.mxu0 0.0
    %267 = vmatprep.subr.mxu0 0.0
    %268 = vmatpush1.xpose.msra.mxu0 0.0
    %269 = vmatprep.subr.mxu0 0.0
    %270 = vmatpush1.xpose.msra.mxu0 0.0
    %271 = vmatprep.subr.mxu0 0.0
    %272 = vmatpush1.xpose.msra.mxu0 0.0
    %273 = vmatprep.subr.mxu0 0.0
    %274 = vmatpush1.xpose.msra.mxu0 0.0
    %275 = vmatprep.subr.mxu0 0.0
    %276 = vmatpush1.xpose.msra.mxu0 0.0
    %277 = vmatprep.subr.mxu0 0.0
    %278 = vmatpush1.xpose.msra.mxu0 0.0
    %279 = vmatprep.subr.mxu0 0.0
    %280 = vmatpush1.xpose.msra.mxu0 0.0
    %281 = vmatprep.mubr.f32.mxu0 0.0
    %282 = vmatmul.mubr.f32.gmra.mrb[0].mxu0 %v212
    %v283 = vpop.f32.mrb[0].mxu0
    %v284 = vadd.f32 0.0, %v283
    %v285 = vpop.f32.mrb[0].mxu0
    %286 = vdwg.mxu0
    %v288 = vsel %vm58, %v55, 0
    %v291 = vsel %vm58, %v49, 0
    %293 = vmatprep.subr.mxu0 0.0
    %294 = vmatpush1.xpose.msra.mxu0 %v291
    %295 = vmatprep.subr.mxu0 0.0
    %296 = vmatpush1.xpose.msra.mxu0 0.0
    %297 = vmatprep.subr.mxu0 0.0
    %298 = vmatpush1.xpose.msra.mxu0 0.0
    %299 = vmatprep.subr.mxu0 0.0
    %300 = vmatpush1.xpose.msra.mxu0 0.0
    %301 = vmatprep.subr.mxu0 0.0
    %302 = vmatpush1.xpose.msra.mxu0 0.0
    %303 = vmatprep.subr.mxu0 0.0
    %304 = vmatpush1.xpose.msra.mxu0 0.0
    %305 = vmatprep.subr.mxu0 0.0
    %306 = vmatpush1.xpose.msra.mxu0 0.0
    %307 = vmatprep.subr.mxu0 0.0
    %308 = vmatpush1.xpose.msra.mxu0 0.0
    %309 = vmatprep.subr.mxu0 0.0
    %310 = vmatpush1.xpose.msra.mxu0 0.0
    %311 = vmatprep.subr.mxu0 0.0
    %312 = vmatpush1.xpose.msra.mxu0 0.0
    %313 = vmatprep.subr.mxu0 0.0
    %314 = vmatpush1.xpose.msra.mxu0 0.0
    %315 = vmatprep.subr.mxu0 0.0
    %316 = vmatpush1.xpose.msra.mxu0 0.0
    %317 = vmatprep.subr.mxu0 0.0
    %318 = vmatpush1.xpose.msra.mxu0 0.0
    %319 = vmatprep.subr.mxu0 0.0
    %320 = vmatpush1.xpose.msra.mxu0 0.0
    %321 = vmatprep.subr.mxu0 0.0
    %322 = vmatpush1.xpose.msra.mxu0 0.0
    %323 = vmatprep.subr.mxu0 0.0
    %324 = vmatpush1.xpose.msra.mxu0 0.0
    %325 = vmatprep.subr.mxu0 0.0
    %326 = vmatpush1.xpose.msra.mxu0 0.0
    %327 = vmatprep.subr.mxu0 0.0
    %328 = vmatpush1.xpose.msra.mxu0 0.0
    %329 = vmatprep.subr.mxu0 0.0
    %330 = vmatpush1.xpose.msra.mxu0 0.0
    %331 = vmatprep.subr.mxu0 0.0
    %332 = vmatpush1.xpose.msra.mxu0 0.0
    %333 = vmatprep.subr.mxu0 0.0
    %334 = vmatpush1.xpose.msra.mxu0 0.0
    %335 = vmatprep.subr.mxu0 0.0
    %336 = vmatpush1.xpose.msra.mxu0 0.0
    %337 = vmatprep.subr.mxu0 0.0
    %338 = vmatpush1.xpose.msra.mxu0 0.0
    %339 = vmatprep.subr.mxu0 0.0
    %340 = vmatpush1.xpose.msra.mxu0 0.0
    %341 = vmatprep.subr.mxu0 0.0
    %342 = vmatpush1.xpose.msra.mxu0 0.0
    %343 = vmatprep.subr.mxu0 0.0
    %344 = vmatpush1.xpose.msra.mxu0 0.0
    %345 = vmatprep.subr.mxu0 0.0
    %346 = vmatpush1.xpose.msra.mxu0 0.0
    %347 = vmatprep.subr.mxu0 0.0
    %348 = vmatpush1.xpose.msra.mxu0 0.0
    %349 = vmatprep.subr.mxu0 0.0
    %350 = vmatpush1.xpose.msra.mxu0 0.0
    %351 = vmatprep.subr.mxu0 0.0
    %352 = vmatpush1.xpose.msra.mxu0 0.0
    %353 = vmatprep.subr.mxu0 0.0
    %354 = vmatpush1.xpose.msra.mxu0 0.0
    %355 = vmatprep.subr.mxu0 0.0
    %356 = vmatpush1.xpose.msra.mxu0 0.0
    %357 = vmatprep.mubr.f32.mxu0 0.0
    %358 = vmatmul.mubr.f32.gmra.mrb[0].mxu0 %v288
    %v359 = vpop.f32.mrb[0].mxu0
    %v360 = vadd.f32 0.0, %v359
    %v361 = vpop.f32.mrb[0].mxu0
    %362 = vdwg.mxu0
    %v364 = vsel %vm58, %v56, 0
    %v367 = vsel %vm58, %v50, 0
    %369 = vmatprep.subr.mxu0 0.0
    %370 = vmatpush1.xpose.msra.mxu0 %v367
    %371 = vmatprep.subr.mxu0 0.0
    %372 = vmatpush1.xpose.msra.mxu0 0.0
    %373 = vmatprep.subr.mxu0 0.0
    %374 = vmatpush1.xpose.msra.mxu0 0.0
    %375 = vmatprep.subr.mxu0 0.0
    %376 = vmatpush1.xpose.msra.mxu0 0.0
    %377 = vmatprep.subr.mxu0 0.0
    %378 = vmatpush1.xpose.msra.mxu0 0.0
    %379 = vmatprep.subr.mxu0 0.0
    %380 = vmatpush1.xpose.msra.mxu0 0.0
    %381 = vmatprep.subr.mxu0 0.0
    %382 = vmatpush1.xpose.msra.mxu0 0.0
    %383 = vmatprep.subr.mxu0 0.0
    %384 = vmatpush1.xpose.msra.mxu0 0.0
    %385 = vmatprep.subr.mxu0 0.0
    %386 = vmatpush1.xpose.msra.mxu0 0.0
    %387 = vmatprep.subr.mxu0 0.0
    %388 = vmatpush1.xpose.msra.mxu0 0.0
    %389 = vmatprep.subr.mxu0 0.0
    %390 = vmatpush1.xpose.msra.mxu0 0.0
    %391 = vmatprep.subr.mxu0 0.0
    %392 = vmatpush1.xpose.msra.mxu0 0.0
    %393 = vmatprep.subr.mxu0 0.0
    %394 = vmatpush1.xpose.msra.mxu0 0.0
    %395 = vmatprep.subr.mxu0 0.0
    %396 = vmatpush1.xpose.msra.mxu0 0.0
    %397 = vmatprep.subr.mxu0 0.0
    %398 = vmatpush1.xpose.msra.mxu0 0.0
    %399 = vmatprep.subr.mxu0 0.0
    %400 = vmatpush1.xpose.msra.mxu0 0.0
    %401 = vmatprep.subr.mxu0 0.0
    %402 = vmatpush1.xpose.msra.mxu0 0.0
    %403 = vmatprep.subr.mxu0 0.0
    %404 = vmatpush1.xpose.msra.mxu0 0.0
    %405 = vmatprep.subr.mxu0 0.0
    %406 = vmatpush1.xpose.msra.mxu0 0.0
    %407 = vmatprep.subr.mxu0 0.0
    %408 = vmatpush1.xpose.msra.mxu0 0.0
    %409 = vmatprep.subr.mxu0 0.0
    %410 = vmatpush1.xpose.msra.mxu0 0.0
    %411 = vmatprep.subr.mxu0 0.0
    %412 = vmatpush1.xpose.msra.mxu0 0.0
    %413 = vmatprep.subr.mxu0 0.0
    %414 = vmatpush1.xpose.msra.mxu0 0.0
    %415 = vmatprep.subr.mxu0 0.0
    %416 = vmatpush1.xpose.msra.mxu0 0.0
    %417 = vmatprep.subr.mxu0 0.0
    %418 = vmatpush1.xpose.msra.mxu0 0.0
    %419 = vmatprep.subr.mxu0 0.0
    %420 = vmatpush1.xpose.msra.mxu0 0.0
    %421 = vmatprep.subr.mxu0 0.0
    %422 = vmatpush1.xpose.msra.mxu0 0.0
    %423 = vmatprep.subr.mxu0 0.0
    %424 = vmatpush1.xpose.msra.mxu0 0.0
    %425 = vmatprep.subr.mxu0 0.0
    %426 = vmatpush1.xpose.msra.mxu0 0.0
    %427 = vmatprep.subr.mxu0 0.0
    %428 = vmatpush1.xpose.msra.mxu0 0.0
    %429 = vmatprep.subr.mxu0 0.0
    %430 = vmatpush1.xpose.msra.mxu0 0.0
    %431 = vmatprep.subr.mxu0 0.0
    %432 = vmatpush1.xpose.msra.mxu0 0.0
    %433 = vmatprep.mubr.f32.mxu0 0.0
    %434 = vmatmul.mubr.f32.gmra.mrb[0].mxu0 %v364
    %v435 = vpop.f32.mrb[0].mxu0
    %v436 = vadd.f32 0.0, %v435
    %v437 = vpop.f32.mrb[0].mxu0
    %438 = vdwg.mxu0
    %v440 = vsel %vm58, %v57, 0
    %v443 = vsel %vm58, %v51, 0
    %445 = vmatprep.subr.mxu0 0.0
    %446 = vmatpush1.xpose.msra.mxu0 %v443
    %447 = vmatprep.subr.mxu0 0.0
    %448 = vmatpush1.xpose.msra.mxu0 0.0
    %449 = vmatprep.subr.mxu0 0.0
    %450 = vmatpush1.xpose.msra.mxu0 0.0
    %451 = vmatprep.subr.mxu0 0.0
    %452 = vmatpush1.xpose.msra.mxu0 0.0
    %453 = vmatprep.subr.mxu0 0.0
    %454 = vmatpush1.xpose.msra.mxu0 0.0
    %455 = vmatprep.subr.mxu0 0.0
    %456 = vmatpush1.xpose.msra.mxu0 0.0
    %457 = vmatprep.subr.mxu0 0.0
    %458 = vmatpush1.xpose.msra.mxu0 0.0
    %459 = vmatprep.subr.mxu0 0.0
    %460 = vmatpush1.xpose.msra.mxu0 0.0
    %461 = vmatprep.subr.mxu0 0.0
    %462 = vmatpush1.xpose.msra.mxu0 0.0
    %463 = vmatprep.subr.mxu0 0.0
    %464 = vmatpush1.xpose.msra.mxu0 0.0
    %465 = vmatprep.subr.mxu0 0.0
    %466 = vmatpush1.xpose.msra.mxu0 0.0
    %467 = vmatprep.subr.mxu0 0.0
    %468 = vmatpush1.xpose.msra.mxu0 0.0
    %469 = vmatprep.subr.mxu0 0.0
    %470 = vmatpush1.xpose.msra.mxu0 0.0
    %471 = vmatprep.subr.mxu0 0.0
    %472 = vmatpush1.xpose.msra.mxu0 0.0
    %473 = vmatprep.subr.mxu0 0.0
    %474 = vmatpush1.xpose.msra.mxu0 0.0
    %475 = vmatprep.subr.mxu0 0.0
    %476 = vmatpush1.xpose.msra.mxu0 0.0
    %477 = vmatprep.subr.mxu0 0.0
    %478 = vmatpush1.xpose.msra.mxu0 0.0
    %479 = vmatprep.subr.mxu0 0.0
    %480 = vmatpush1.xpose.msra.mxu0 0.0
    %481 = vmatprep.subr.mxu0 0.0
    %482 = vmatpush1.xpose.msra.mxu0 0.0
    %483 = vmatprep.subr.mxu0 0.0
    %484 = vmatpush1.xpose.msra.mxu0 0.0
    %485 = vmatprep.subr.mxu0 0.0
    %486 = vmatpush1.xpose.msra.mxu0 0.0
    %487 = vmatprep.subr.mxu0 0.0
    %488 = vmatpush1.xpose.msra.mxu0 0.0
    %489 = vmatprep.subr.mxu0 0.0
    %490 = vmatpush1.xpose.msra.mxu0 0.0
    %491 = vmatprep.subr.mxu0 0.0
    %492 = vmatpush1.xpose.msra.mxu0 0.0
    %493 = vmatprep.subr.mxu0 0.0
    %494 = vmatpush1.xpose.msra.mxu0 0.0
    %495 = vmatprep.subr.mxu0 0.0
    %496 = vmatpush1.xpose.msra.mxu0 0.0
    %497 = vmatprep.subr.mxu0 0.0
    %498 = vmatpush1.xpose.msra.mxu0 0.0
    %499 = vmatprep.subr.mxu0 0.0
    %500 = vmatpush1.xpose.msra.mxu0 0.0
    %501 = vmatprep.subr.mxu0 0.0
    %502 = vmatpush1.xpose.msra.mxu0 0.0
    %503 = vmatprep.subr.mxu0 0.0
    %504 = vmatpush1.xpose.msra.mxu0 0.0
    %505 = vmatprep.subr.mxu0 0.0
    %506 = vmatpush1.xpose.msra.mxu0 0.0
    %507 = vmatprep.subr.mxu0 0.0
    %508 = vmatpush1.xpose.msra.mxu0 0.0
    %509 = vmatprep.mubr.f32.mxu0 0.0
    %510 = vmatmul.mubr.f32.gmra.mrb[0].mxu0 %v440
    %v511 = vpop.f32.mrb[0].mxu0
    %v512 = vadd.f32 0.0, %v511
    %v513 = vpop.f32.mrb[0].mxu0
    %514 = vdwg.mxu0
    %v515 = vmul.f32 %v132, 0.17677669
    %v516 = vmul.f32 %v208, 0.17677669
    %v517 = vmul.f32 %v284, 0.17677669
    %v518 = vmul.f32 %v360, 0.17677669
    %v519 = vmul.f32 %v436, 0.17677669
    %v520 = vmul.f32 %v512, 0.17677669
    %vm521 = vcmask 60416
    %v522 = vsel %vm521, %v515, -inf
    %523 = vmax.xlane.f32.xlu0 %v522
    %v524 = vpop.xlane.xlu0 %523
    %v525 = vsel %vm521, %v516, -inf
    %526 = vmax.xlane.f32.xlu0 %v525
    %v527 = vpop.xlane.xlu0 %526
    %v528 = vsel %vm521, %v517, -inf
    %529 = vmax.xlane.f32.xlu0 %v528
    %v530 = vpop.xlane.xlu0 %529
    %v531 = vsel %vm521, %v518, -inf
    %532 = vmax.xlane.f32.xlu0 %v531
    %v533 = vpop.xlane.xlu0 %532
    %v534 = vsel %vm521, %v519, -inf
    %535 = vmax.xlane.f32.xlu0 %v534
    %v536 = vpop.xlane.xlu0 %535
    %v537 = vsel %vm521, %v520, -inf
    %538 = vmax.xlane.f32.xlu0 %v537
    %v539 = vpop.xlane.xlu0 %538
    %vm540 = vcmask 1043456
    %v541 = vsel %vm540, %v524, -inf
    %v542 = vrot.slane %v541, 4
    %v543 = vmax.f32 %v541, %v542
    %v544 = vrot.slane %v543, 2
    %v545 = vmax.f32 %v543, %v544
    %v546 = vrot.slane %v545, 1
    %v547 = vmax.f32 %v545, %v546
    %v548 = vsel %vm540, %v527, -inf
    %v549 = vrot.slane %v548, 4
    %v550 = vmax.f32 %v548, %v549
    %v551 = vrot.slane %v550, 2
    %v552 = vmax.f32 %v550, %v551
    %v553 = vrot.slane %v552, 1
    %v554 = vmax.f32 %v552, %v553
    %v555 = vsel %vm540, %v530, -inf
    %v556 = vrot.slane %v555, 4
    %v557 = vmax.f32 %v555, %v556
    %v558 = vrot.slane %v557, 2
    %v559 = vmax.f32 %v557, %v558
    %v560 = vrot.slane %v559, 1
    %v561 = vmax.f32 %v559, %v560
    %v562 = vsel %vm540, %v533, -inf
    %v563 = vrot.slane %v562, 4
    %v564 = vmax.f32 %v562, %v563
    %v565 = vrot.slane %v564, 2
    %v566 = vmax.f32 %v564, %v565
    %v567 = vrot.slane %v566, 1
    %v568 = vmax.f32 %v566, %v567
    %v569 = vsel %vm540, %v536, -inf
    %v570 = vrot.slane %v569, 4
    %v571 = vmax.f32 %v569, %v570
    %v572 = vrot.slane %v571, 2
    %v573 = vmax.f32 %v571, %v572
    %v574 = vrot.slane %v573, 1
    %v575 = vmax.f32 %v573, %v574
    %v576 = vsel %vm540, %v539, -inf
    %v577 = vrot.slane %v576, 4
    %v578 = vmax.f32 %v576, %v577
    %v579 = vrot.slane %v578, 2
    %v580 = vmax.f32 %v578, %v579
    %v581 = vrot.slane %v580, 1
    %v582 = vmax.f32 %v580, %v581
    %v583 = vsub.f32 %v515, %v547
    %v584 = vsub.f32 %v516, %v554
    %v585 = vsub.f32 %v517, %v561
    %v586 = vsub.f32 %v518, %v568
    %v587 = vsub.f32 %v519, %v575
    %v588 = vsub.f32 %v520, %v582
    %v589 = vmul.f32 %v583, 1.442695
    %v590 = vpow.pop %v589
    %v591 = vmul.f32 %v584, 1.442695
    %v592 = vpow.pop %v591
    %v593 = vmul.f32 %v585, 1.442695
    %v594 = vpow.pop %v593
    %v595 = vmul.f32 %v586, 1.442695
    %v596 = vpow.pop %v595
    %v597 = vmul.f32 %v587, 1.442695
    %v598 = vpow.pop %v597
    %v599 = vmul.f32 %v588, 1.442695
    %v600 = vpow.pop %v599
    %v601 = vsel %vm521, %v590, 0.0
    %602 = vadd.xlane.f32.xlu0 %v601
    %v603 = vpop.xlane.xlu0 %602
    %v604 = vsel %vm521, %v592, 0.0
    %605 = vadd.xlane.f32.xlu0 %v604
    %v606 = vpop.xlane.xlu0 %605
    %v607 = vsel %vm521, %v594, 0.0
    %608 = vadd.xlane.f32.xlu0 %v607
    %v609 = vpop.xlane.xlu0 %608
    %v610 = vsel %vm521, %v596, 0.0
    %611 = vadd.xlane.f32.xlu0 %v610
    %v612 = vpop.xlane.xlu0 %611
    %v613 = vsel %vm521, %v598, 0.0
    %614 = vadd.xlane.f32.xlu0 %v613
    %v615 = vpop.xlane.xlu0 %614
    %v616 = vsel %vm521, %v600, 0.0
    %617 = vadd.xlane.f32.xlu0 %v616
    %v618 = vpop.xlane.xlu0 %617
    %v619 = vrcp.pop %v603
    %v620 = vrcp.pop %v606
    %v621 = vrcp.pop %v609
    %v622 = vrcp.pop %v612
    %v623 = vrcp.pop %v615
    %v624 = vrcp.pop %v618
    %v625 = vmul.f32 %v590, %v619
    %v626 = vmul.f32 %v592, %v620
    %v627 = vmul.f32 %v594, %v621
    %v628 = vmul.f32 %v596, %v622
    %v629 = vmul.f32 %v598, %v623
    %v630 = vmul.f32 %v600, %v624
    %v631 = vrot.slane %v601, 4
    %v632 = vadd.f32 %v601, %v631
    %v633 = vrot.slane %v632, 2
    %v634 = vadd.f32 %v632, %v633
    %v635 = vrot.slane %v634, 1
    %v636 = vadd.f32 %v634, %v635
    %v637 = vrot.slane %v604, 4
    %v638 = vadd.f32 %v604, %v637
    %v639 = vrot.slane %v638, 2
    %v640 = vadd.f32 %v638, %v639
    %v641 = vrot.slane %v640, 1
    %v642 = vadd.f32 %v640, %v641
    %v643 = vrot.slane %v607, 4
    %v644 = vadd.f32 %v607, %v643
    %v645 = vrot.slane %v644, 2
    %v646 = vadd.f32 %v644, %v645
    %v647 = vrot.slane %v646, 1
    %v648 = vadd.f32 %v646, %v647
    %v649 = vrot.slane %v610, 4
    %v650 = vadd.f32 %v610, %v649
    %v651 = vrot.slane %v650, 2
    %v652 = vadd.f32 %v650, %v651
    %v653 = vrot.slane %v652, 1
    %v654 = vadd.f32 %v652, %v653
    %v655 = vrot.slane %v613, 4
    %v656 = vadd.f32 %v613, %v655
    %v657 = vrot.slane %v656, 2
    %v658 = vadd.f32 %v656, %v657
    %v659 = vrot.slane %v658, 1
    %v660 = vadd.f32 %v658, %v659
    %v661 = vrot.slane %v616, 4
    %v662 = vadd.f32 %v616, %v661
    %v663 = vrot.slane %v662, 2
    %v664 = vadd.f32 %v662, %v663
    %v665 = vrot.slane %v664, 1
    %v666 = vadd.f32 %v664, %v665
    %v667 = vrcp.pop %v636
    %v668 = vrcp.pop %v642
    %v669 = vrcp.pop %v648
    %v670 = vrcp.pop %v654
    %v671 = vrcp.pop %v660
    %v672 = vrcp.pop %v666
    %v673 = vmul.f32 %v590, %v667
    %v674 = vmul.f32 %v592, %v668
    %v675 = vmul.f32 %v594, %v669
    %v676 = vmul.f32 %v596, %v670
    %v677 = vmul.f32 %v598, %v671
    %v678 = vmul.f32 %v600, %v672
    %679 = vxpose.xlu0.b32.start [1/16] %v673, 128
    %680 = vxpose.xlu0.b32.cont [2/16] 0.0, 128
    %681 = vxpose.xlu0.b32.cont [3/16] 0.0, 128
    %682 = vxpose.xlu0.b32.cont [4/16] 0.0, 128
    %683 = vxpose.xlu0.b32.cont [5/16] 0.0, 128
    %684 = vxpose.xlu0.b32.cont [6/16] 0.0, 128
    %685 = vxpose.xlu0.b32.cont [7/16] 0.0, 128
    %686 = vxpose.xlu0.b32.cont [8/16] 0.0, 128
    %687 = vxpose.xlu0.b32.cont [9/16] 0.0, 128
    %688 = vxpose.xlu0.b32.cont [10/16] 0.0, 128
    %689 = vxpose.xlu0.b32.cont [11/16] 0.0, 128
    %690 = vxpose.xlu0.b32.cont [12/16] 0.0, 128
    %691 = vxpose.xlu0.b32.cont [13/16] 0.0, 128
    %692 = vxpose.xlu0.b32.cont [14/16] 0.0, 128
    %693 = vxpose.xlu0.b32.cont [15/16] 0.0, 128
    %694 = vxpose.xlu0.b32.end [16/16] 0.0, 128
    %v695 = vpop.trf.xlu0
    %v696 = vpop.trf.xlu0
    %v697 = vpop.trf.xlu0
    %v698 = vpop.trf.xlu0
    %v699 = vpop.trf.xlu0
    %v700 = vpop.trf.xlu0
    %v701 = vpop.trf.xlu0
    %v702 = vpop.trf.xlu0
    %v703 = vpop.trf.xlu0
    %v704 = vpop.trf.xlu0
    %v705 = vpop.trf.xlu0
    %v706 = vpop.trf.xlu0
    %v707 = vpop.trf.xlu0
    %v708 = vpop.trf.xlu0
    %v709 = vpop.trf.xlu0
    %v710 = vpop.trf.xlu0
    %vm711 = vcmask 31744
    %v713 = vsel %vm711, %v695, 0
    %v715 = vsel %vm540, %v52, 0
    %717 = vmatprep.subr.mxu0 0.0
    %718 = vmatpush1.msra.mxu0 %v715
    %719 = vmatprep.subr.mxu0 0.0
    %720 = vmatpush1.msra.mxu0 0.0
    %721 = vmatprep.subr.mxu0 0.0
    %722 = vmatpush1.msra.mxu0 0.0
    %723 = vmatprep.subr.mxu0 0.0
    %724 = vmatpush1.msra.mxu0 0.0
    %725 = vmatprep.subr.mxu0 0.0
    %726 = vmatpush1.msra.mxu0 0.0
    %727 = vmatprep.subr.mxu0 0.0
    %728 = vmatpush1.msra.mxu0 0.0
    %729 = vmatprep.subr.mxu0 0.0
    %730 = vmatpush1.msra.mxu0 0.0
    %731 = vmatprep.subr.mxu0 0.0
    %732 = vmatpush1.msra.mxu0 0.0
    %733 = vmatprep.subr.mxu0 0.0
    %734 = vmatpush1.msra.mxu0 0.0
    %735 = vmatprep.subr.mxu0 0.0
    %736 = vmatpush1.msra.mxu0 0.0
    %737 = vmatprep.subr.mxu0 0.0
    %738 = vmatpush1.msra.mxu0 0.0
    %739 = vmatprep.subr.mxu0 0.0
    %740 = vmatpush1.msra.mxu0 0.0
    %741 = vmatprep.subr.mxu0 0.0
    %742 = vmatpush1.msra.mxu0 0.0
    %743 = vmatprep.subr.mxu0 0.0
    %744 = vmatpush1.msra.mxu0 0.0
    %745 = vmatprep.subr.mxu0 0.0
    %746 = vmatpush1.msra.mxu0 0.0
    %747 = vmatprep.subr.mxu0 0.0
    %748 = vmatpush1.msra.mxu0 0.0
    %749 = vmatprep.subr.mxu0 0.0
    %750 = vmatpush1.msra.mxu0 0.0
    %751 = vmatprep.subr.mxu0 0.0
    %752 = vmatpush1.msra.mxu0 0.0
    %753 = vmatprep.subr.mxu0 0.0
    %754 = vmatpush1.msra.mxu0 0.0
    %755 = vmatprep.subr.mxu0 0.0
    %756 = vmatpush1.msra.mxu0 0.0
    %757 = vmatprep.subr.mxu0 0.0
    %758 = vmatpush1.msra.mxu0 0.0
    %759 = vmatprep.subr.mxu0 0.0
    %760 = vmatpush1.msra.mxu0 0.0
    %761 = vmatprep.subr.mxu0 0.0
    %762 = vmatpush1.msra.mxu0 0.0
    %763 = vmatprep.subr.mxu0 0.0
    %764 = vmatpush1.msra.mxu0 0.0
    %765 = vmatprep.subr.mxu0 0.0
    %766 = vmatpush1.msra.mxu0 0.0
    %767 = vmatprep.subr.mxu0 0.0
    %768 = vmatpush1.msra.mxu0 0.0
    %769 = vmatprep.subr.mxu0 0.0
    %770 = vmatpush1.msra.mxu0 0.0
    %771 = vmatprep.subr.mxu0 0.0
    %772 = vmatpush1.msra.mxu0 0.0
    %773 = vmatprep.subr.mxu0 0.0
    %774 = vmatpush1.msra.mxu0 0.0
    %775 = vmatprep.subr.mxu0 0.0
    %776 = vmatpush1.msra.mxu0 0.0
    %777 = vmatprep.subr.mxu0 0.0
    %778 = vmatpush1.msra.mxu0 0.0
    %779 = vmatprep.subr.mxu0 0.0
    %780 = vmatpush1.msra.mxu0 0.0
    %781 = vmatprep.mubr.f32.mxu0 0.0
    %782 = vmatmul.mubr.f32.gmra.mrb[0].mxu0 %v713
    %v783 = vpop.f32.mrb[0].mxu0
    %v784 = vadd.f32 0.0, %v783
    %v785 = vpop.f32.mrb[0].mxu0
    %786 = vdwg.mxu0
    %787 = vxpose.xlu0.b32.start [1/16] %v674, 128
    %788 = vxpose.xlu0.b32.cont [2/16] 0.0, 128
    %789 = vxpose.xlu0.b32.cont [3/16] 0.0, 128
    %790 = vxpose.xlu0.b32.cont [4/16] 0.0, 128
    %791 = vxpose.xlu0.b32.cont [5/16] 0.0, 128
    %792 = vxpose.xlu0.b32.cont [6/16] 0.0, 128
    %793 = vxpose.xlu0.b32.cont [7/16] 0.0, 128
    %794 = vxpose.xlu0.b32.cont [8/16] 0.0, 128
    %795 = vxpose.xlu0.b32.cont [9/16] 0.0, 128
    %796 = vxpose.xlu0.b32.cont [10/16] 0.0, 128
    %797 = vxpose.xlu0.b32.cont [11/16] 0.0, 128
    %798 = vxpose.xlu0.b32.cont [12/16] 0.0, 128
    %799 = vxpose.xlu0.b32.cont [13/16] 0.0, 128
    %800 = vxpose.xlu0.b32.cont [14/16] 0.0, 128
    %801 = vxpose.xlu0.b32.cont [15/16] 0.0, 128
    %802 = vxpose.xlu0.b32.end [16/16] 0.0, 128
    %v803 = vpop.trf.xlu0
    %v804 = vpop.trf.xlu0
    %v805 = vpop.trf.xlu0
    %v806 = vpop.trf.xlu0
    %v807 = vpop.trf.xlu0
    %v808 = vpop.trf.xlu0
    %v809 = vpop.trf.xlu0
    %v810 = vpop.trf.xlu0
    %v811 = vpop.trf.xlu0
    %v812 = vpop.trf.xlu0
    %v813 = vpop.trf.xlu0
    %v814 = vpop.trf.xlu0
    %v815 = vpop.trf.xlu0
    %v816 = vpop.trf.xlu0
    %v817 = vpop.trf.xlu0
    %v818 = vpop.trf.xlu0
    %v820 = vsel %vm711, %v803, 0
    %v822 = vsel %vm540, %v53, 0
    %824 = vmatprep.subr.mxu0 0.0
    %825 = vmatpush1.msra.mxu0 %v822
    %826 = vmatprep.subr.mxu0 0.0
    %827 = vmatpush1.msra.mxu0 0.0
    %828 = vmatprep.subr.mxu0 0.0
    %829 = vmatpush1.msra.mxu0 0.0
    %830 = vmatprep.subr.mxu0 0.0
    %831 = vmatpush1.msra.mxu0 0.0
    %832 = vmatprep.subr.mxu0 0.0
    %833 = vmatpush1.msra.mxu0 0.0
    %834 = vmatprep.subr.mxu0 0.0
    %835 = vmatpush1.msra.mxu0 0.0
    %836 = vmatprep.subr.mxu0 0.0
    %837 = vmatpush1.msra.mxu0 0.0
    %838 = vmatprep.subr.mxu0 0.0
    %839 = vmatpush1.msra.mxu0 0.0
    %840 = vmatprep.subr.mxu0 0.0
    %841 = vmatpush1.msra.mxu0 0.0
    %842 = vmatprep.subr.mxu0 0.0
    %843 = vmatpush1.msra.mxu0 0.0
    %844 = vmatprep.subr.mxu0 0.0
    %845 = vmatpush1.msra.mxu0 0.0
    %846 = vmatprep.subr.mxu0 0.0
    %847 = vmatpush1.msra.mxu0 0.0
    %848 = vmatprep.subr.mxu0 0.0
    %849 = vmatpush1.msra.mxu0 0.0
    %850 = vmatprep.subr.mxu0 0.0
    %851 = vmatpush1.msra.mxu0 0.0
    %852 = vmatprep.subr.mxu0 0.0
    %853 = vmatpush1.msra.mxu0 0.0
    %854 = vmatprep.subr.mxu0 0.0
    %855 = vmatpush1.msra.mxu0 0.0
    %856 = vmatprep.subr.mxu0 0.0
    %857 = vmatpush1.msra.mxu0 0.0
    %858 = vmatprep.subr.mxu0 0.0
    %859 = vmatpush1.msra.mxu0 0.0
    %860 = vmatprep.subr.mxu0 0.0
    %861 = vmatpush1.msra.mxu0 0.0
    %862 = vmatprep.subr.mxu0 0.0
    %863 = vmatpush1.msra.mxu0 0.0
    %864 = vmatprep.subr.mxu0 0.0
    %865 = vmatpush1.msra.mxu0 0.0
    %866 = vmatprep.subr.mxu0 0.0
    %867 = vmatpush1.msra.mxu0 0.0
    %868 = vmatprep.subr.mxu0 0.0
    %869 = vmatpush1.msra.mxu0 0.0
    %870 = vmatprep.subr.mxu0 0.0
    %871 = vmatpush1.msra.mxu0 0.0
    %872 = vmatprep.subr.mxu0 0.0
    %873 = vmatpush1.msra.mxu0 0.0
    %874 = vmatprep.subr.mxu0 0.0
    %875 = vmatpush1.msra.mxu0 0.0
    %876 = vmatprep.subr.mxu0 0.0
    %877 = vmatpush1.msra.mxu0 0.0
    %878 = vmatprep.subr.mxu0 0.0
    %879 = vmatpush1.msra.mxu0 0.0
    %880 = vmatprep.subr.mxu0 0.0
    %881 = vmatpush1.msra.mxu0 0.0
    %882 = vmatprep.subr.mxu0 0.0
    %883 = vmatpush1.msra.mxu0 0.0
    %884 = vmatprep.subr.mxu0 0.0
    %885 = vmatpush1.msra.mxu0 0.0
    %886 = vmatprep.subr.mxu0 0.0
    %887 = vmatpush1.msra.mxu0 0.0
    %888 = vmatprep.mubr.f32.mxu0 0.0
    %889 = vmatmul.mubr.f32.gmra.mrb[0].mxu0 %v820
    %v890 = vpop.f32.mrb[0].mxu0
    %v891 = vadd.f32 0.0, %v890
    %v892 = vpop.f32.mrb[0].mxu0
    %893 = vdwg.mxu0
    %894 = vxpose.xlu0.b32.start [1/16] %v675, 128
    %895 = vxpose.xlu0.b32.cont [2/16] 0.0, 128
    %896 = vxpose.xlu0.b32.cont [3/16] 0.0, 128
    %897 = vxpose.xlu0.b32.cont [4/16] 0.0, 128
    %898 = vxpose.xlu0.b32.cont [5/16] 0.0, 128
    %899 = vxpose.xlu0.b32.cont [6/16] 0.0, 128
    %900 = vxpose.xlu0.b32.cont [7/16] 0.0, 128
    %901 = vxpose.xlu0.b32.cont [8/16] 0.0, 128
    %902 = vxpose.xlu0.b32.cont [9/16] 0.0, 128
    %903 = vxpose.xlu0.b32.cont [10/16] 0.0, 128
    %904 = vxpose.xlu0.b32.cont [11/16] 0.0, 128
    %905 = vxpose.xlu0.b32.cont [12/16] 0.0, 128
    %906 = vxpose.xlu0.b32.cont [13/16] 0.0, 128
    %907 = vxpose.xlu0.b32.cont [14/16] 0.0, 128
    %908 = vxpose.xlu0.b32.cont [15/16] 0.0, 128
    %909 = vxpose.xlu0.b32.end [16/16] 0.0, 128
    %v910 = vpop.trf.xlu0
    %v911 = vpop.trf.xlu0
    %v912 = vpop.trf.xlu0
    %v913 = vpop.trf.xlu0
    %v914 = vpop.trf.xlu0
    %v915 = vpop.trf.xlu0
    %v916 = vpop.trf.xlu0
    %v917 = vpop.trf.xlu0
    %v918 = vpop.trf.xlu0
    %v919 = vpop.trf.xlu0
    %v920 = vpop.trf.xlu0
    %v921 = vpop.trf.xlu0
    %v922 = vpop.trf.xlu0
    %v923 = vpop.trf.xlu0
    %v924 = vpop.trf.xlu0
    %v925 = vpop.trf.xlu0
    %v927 = vsel %vm711, %v910, 0
    %v929 = vsel %vm540, %v54, 0
    %931 = vmatprep.subr.mxu0 0.0
    %932 = vmatpush1.msra.mxu0 %v929
    %933 = vmatprep.subr.mxu0 0.0
    %934 = vmatpush1.msra.mxu0 0.0
    %935 = vmatprep.subr.mxu0 0.0
    %936 = vmatpush1.msra.mxu0 0.0
    %937 = vmatprep.subr.mxu0 0.0
    %938 = vmatpush1.msra.mxu0 0.0
    %939 = vmatprep.subr.mxu0 0.0
    %940 = vmatpush1.msra.mxu0 0.0
    %941 = vmatprep.subr.mxu0 0.0
    %942 = vmatpush1.msra.mxu0 0.0
    %943 = vmatprep.subr.mxu0 0.0
    %944 = vmatpush1.msra.mxu0 0.0
    %945 = vmatprep.subr.mxu0 0.0
    %946 = vmatpush1.msra.mxu0 0.0
    %947 = vmatprep.subr.mxu0 0.0
    %948 = vmatpush1.msra.mxu0 0.0
    %949 = vmatprep.subr.mxu0 0.0
    %950 = vmatpush1.msra.mxu0 0.0
    %951 = vmatprep.subr.mxu0 0.0
    %952 = vmatpush1.msra.mxu0 0.0
    %953 = vmatprep.subr.mxu0 0.0
    %954 = vmatpush1.msra.mxu0 0.0
    %955 = vmatprep.subr.mxu0 0.0
    %956 = vmatpush1.msra.mxu0 0.0
    %957 = vmatprep.subr.mxu0 0.0
    %958 = vmatpush1.msra.mxu0 0.0
    %959 = vmatprep.subr.mxu0 0.0
    %960 = vmatpush1.msra.mxu0 0.0
    %961 = vmatprep.subr.mxu0 0.0
    %962 = vmatpush1.msra.mxu0 0.0
    %963 = vmatprep.subr.mxu0 0.0
    %964 = vmatpush1.msra.mxu0 0.0
    %965 = vmatprep.subr.mxu0 0.0
    %966 = vmatpush1.msra.mxu0 0.0
    %967 = vmatprep.subr.mxu0 0.0
    %968 = vmatpush1.msra.mxu0 0.0
    %969 = vmatprep.subr.mxu0 0.0
    %970 = vmatpush1.msra.mxu0 0.0
    %971 = vmatprep.subr.mxu0 0.0
    %972 = vmatpush1.msra.mxu0 0.0
    %973 = vmatprep.subr.mxu0 0.0
    %974 = vmatpush1.msra.mxu0 0.0
    %975 = vmatprep.subr.mxu0 0.0
    %976 = vmatpush1.msra.mxu0 0.0
    %977 = vmatprep.subr.mxu0 0.0
    %978 = vmatpush1.msra.mxu0 0.0
    %979 = vmatprep.subr.mxu0 0.0
    %980 = vmatpush1.msra.mxu0 0.0
    %981 = vmatprep.subr.mxu0 0.0
    %982 = vmatpush1.msra.mxu0 0.0
    %983 = vmatprep.subr.mxu0 0.0
    %984 = vmatpush1.msra.mxu0 0.0
    %985 = vmatprep.subr.mxu0 0.0
    %986 = vmatpush1.msra.mxu0 0.0
    %987 = vmatprep.subr.mxu0 0.0
    %988 = vmatpush1.msra.mxu0 0.0
    %989 = vmatprep.subr.mxu0 0.0
    %990 = vmatpush1.msra.mxu0 0.0
    %991 = vmatprep.subr.mxu0 0.0
    %992 = vmatpush1.msra.mxu0 0.0
    %993 = vmatprep.subr.mxu0 0.0
    %994 = vmatpush1.msra.mxu0 0.0
    %995 = vmatprep.mubr.f32.mxu0 0.0
    %996 = vmatmul.mubr.f32.gmra.mrb[0].mxu0 %v927
    %v997 = vpop.f32.mrb[0].mxu0
    %v998 = vadd.f32 0.0, %v997
    %v999 = vpop.f32.mrb[0].mxu0
    %1000 = vdwg.mxu0
    %1001 = vxpose.xlu0.b32.start [1/16] %v676, 128
    %1002 = vxpose.xlu0.b32.cont [2/16] 0.0, 128
    %1003 = vxpose.xlu0.b32.cont [3/16] 0.0, 128
    %1004 = vxpose.xlu0.b32.cont [4/16] 0.0, 128
    %1005 = vxpose.xlu0.b32.cont [5/16] 0.0, 128
    %1006 = vxpose.xlu0.b32.cont [6/16] 0.0, 128
    %1007 = vxpose.xlu0.b32.cont [7/16] 0.0, 128
    %1008 = vxpose.xlu0.b32.cont [8/16] 0.0, 128
    %1009 = vxpose.xlu0.b32.cont [9/16] 0.0, 128
    %1010 = vxpose.xlu0.b32.cont [10/16] 0.0, 128
    %1011 = vxpose.xlu0.b32.cont [11/16] 0.0, 128
    %1012 = vxpose.xlu0.b32.cont [12/16] 0.0, 128
    %1013 = vxpose.xlu0.b32.cont [13/16] 0.0, 128
    %1014 = vxpose.xlu0.b32.cont [14/16] 0.0, 128
    %1015 = vxpose.xlu0.b32.cont [15/16] 0.0, 128
    %1016 = vxpose.xlu0.b32.end [16/16] 0.0, 128
    %v1017 = vpop.trf.xlu0
    %v1018 = vpop.trf.xlu0
    %v1019 = vpop.trf.xlu0
    %v1020 = vpop.trf.xlu0
    %v1021 = vpop.trf.xlu0
    %v1022 = vpop.trf.xlu0
    %v1023 = vpop.trf.xlu0
    %v1024 = vpop.trf.xlu0
    %v1025 = vpop.trf.xlu0
    %v1026 = vpop.trf.xlu0
    %v1027 = vpop.trf.xlu0
    %v1028 = vpop.trf.xlu0
    %v1029 = vpop.trf.xlu0
    %v1030 = vpop.trf.xlu0
    %v1031 = vpop.trf.xlu0
    %v1032 = vpop.trf.xlu0
    %v1034 = vsel %vm711, %v1017, 0
    %v1036 = vsel %vm540, %v55, 0
    %1038 = vmatprep.subr.mxu0 0.0
    %1039 = vmatpush1.msra.mxu0 %v1036
    %1040 = vmatprep.subr.mxu0 0.0
    %1041 = vmatpush1.msra.mxu0 0.0
    %1042 = vmatprep.subr.mxu0 0.0
    %1043 = vmatpush1.msra.mxu0 0.0
    %1044 = vmatprep.subr.mxu0 0.0
    %1045 = vmatpush1.msra.mxu0 0.0
    %1046 = vmatprep.subr.mxu0 0.0
    %1047 = vmatpush1.msra.mxu0 0.0
    %1048 = vmatprep.subr.mxu0 0.0
    %1049 = vmatpush1.msra.mxu0 0.0
    %1050 = vmatprep.subr.mxu0 0.0
    %1051 = vmatpush1.msra.mxu0 0.0
    %1052 = vmatprep.subr.mxu0 0.0
    %1053 = vmatpush1.msra.mxu0 0.0
    %1054 = vmatprep.subr.mxu0 0.0
    %1055 = vmatpush1.msra.mxu0 0.0
    %1056 = vmatprep.subr.mxu0 0.0
    %1057 = vmatpush1.msra.mxu0 0.0
    %1058 = vmatprep.subr.mxu0 0.0
    %1059 = vmatpush1.msra.mxu0 0.0
    %1060 = vmatprep.subr.mxu0 0.0
    %1061 = vmatpush1.msra.mxu0 0.0
    %1062 = vmatprep.subr.mxu0 0.0
    %1063 = vmatpush1.msra.mxu0 0.0
    %1064 = vmatprep.subr.mxu0 0.0
    %1065 = vmatpush1.msra.mxu0 0.0
    %1066 = vmatprep.subr.mxu0 0.0
    %1067 = vmatpush1.msra.mxu0 0.0
    %1068 = vmatprep.subr.mxu0 0.0
    %1069 = vmatpush1.msra.mxu0 0.0
    %1070 = vmatprep.subr.mxu0 0.0
    %1071 = vmatpush1.msra.mxu0 0.0
    %1072 = vmatprep.subr.mxu0 0.0
    %1073 = vmatpush1.msra.mxu0 0.0
    %1074 = vmatprep.subr.mxu0 0.0
    %1075 = vmatpush1.msra.mxu0 0.0
    %1076 = vmatprep.subr.mxu0 0.0
    %1077 = vmatpush1.msra.mxu0 0.0
    %1078 = vmatprep.subr.mxu0 0.0
    %1079 = vmatpush1.msra.mxu0 0.0
    %1080 = vmatprep.subr.mxu0 0.0
    %1081 = vmatpush1.msra.mxu0 0.0
    %1082 = vmatprep.subr.mxu0 0.0
    %1083 = vmatpush1.msra.mxu0 0.0
    %1084 = vmatprep.subr.mxu0 0.0
    %1085 = vmatpush1.msra.mxu0 0.0
    %1086 = vmatprep.subr.mxu0 0.0
    %1087 = vmatpush1.msra.mxu0 0.0
    %1088 = vmatprep.subr.mxu0 0.0
    %1089 = vmatpush1.msra.mxu0 0.0
    %1090 = vmatprep.subr.mxu0 0.0
    %1091 = vmatpush1.msra.mxu0 0.0
    %1092 = vmatprep.subr.mxu0 0.0
    %1093 = vmatpush1.msra.mxu0 0.0
    %1094 = vmatprep.subr.mxu0 0.0
    %1095 = vmatpush1.msra.mxu0 0.0
    %1096 = vmatprep.subr.mxu0 0.0
    %1097 = vmatpush1.msra.mxu0 0.0
    %1098 = vmatprep.subr.mxu0 0.0
    %1099 = vmatpush1.msra.mxu0 0.0
    %1100 = vmatprep.subr.mxu0 0.0
    %1101 = vmatpush1.msra.mxu0 0.0
    %1102 = vmatprep.mubr.f32.mxu0 0.0
    %1103 = vmatmul.mubr.f32.gmra.mrb[0].mxu0 %v1034
    %v1104 = vpop.f32.mrb[0].mxu0
    %v1105 = vadd.f32 0.0, %v1104
    %v1106 = vpop.f32.mrb[0].mxu0
    %1107 = vdwg.mxu0
    %1108 = vxpose.xlu0.b32.start [1/16] %v677, 128
    %1109 = vxpose.xlu0.b32.cont [2/16] 0.0, 128
    %1110 = vxpose.xlu0.b32.cont [3/16] 0.0, 128
    %1111 = vxpose.xlu0.b32.cont [4/16] 0.0, 128
    %1112 = vxpose.xlu0.b32.cont [5/16] 0.0, 128
    %1113 = vxpose.xlu0.b32.cont [6/16] 0.0, 128
    %1114 = vxpose.xlu0.b32.cont [7/16] 0.0, 128
    %1115 = vxpose.xlu0.b32.cont [8/16] 0.0, 128
    %1116 = vxpose.xlu0.b32.cont [9/16] 0.0, 128
    %1117 = vxpose.xlu0.b32.cont [10/16] 0.0, 128
    %1118 = vxpose.xlu0.b32.cont [11/16] 0.0, 128
    %1119 = vxpose.xlu0.b32.cont [12/16] 0.0, 128
    %1120 = vxpose.xlu0.b32.cont [13/16] 0.0, 128
    %1121 = vxpose.xlu0.b32.cont [14/16] 0.0, 128
    %1122 = vxpose.xlu0.b32.cont [15/16] 0.0, 128
    %1123 = vxpose.xlu0.b32.end [16/16] 0.0, 128
    %v1124 = vpop.trf.xlu0
    %v1125 = vpop.trf.xlu0
    %v1126 = vpop.trf.xlu0
    %v1127 = vpop.trf.xlu0
    %v1128 = vpop.trf.xlu0
    %v1129 = vpop.trf.xlu0
    %v1130 = vpop.trf.xlu0
    %v1131 = vpop.trf.xlu0
    %v1132 = vpop.trf.xlu0
    %v1133 = vpop.trf.xlu0
    %v1134 = vpop.trf.xlu0
    %v1135 = vpop.trf.xlu0
    %v1136 = vpop.trf.xlu0
    %v1137 = vpop.trf.xlu0
    %v1138 = vpop.trf.xlu0
    %v1139 = vpop.trf.xlu0
    %v1141 = vsel %vm711, %v1124, 0
    %v1143 = vsel %vm540, %v56, 0
    %1145 = vmatprep.subr.mxu0 0.0
    %1146 = vmatpush1.msra.mxu0 %v1143
    %1147 = vmatprep.subr.mxu0 0.0
    %1148 = vmatpush1.msra.mxu0 0.0
    %1149 = vmatprep.subr.mxu0 0.0
    %1150 = vmatpush1.msra.mxu0 0.0
    %1151 = vmatprep.subr.mxu0 0.0
    %1152 = vmatpush1.msra.mxu0 0.0
    %1153 = vmatprep.subr.mxu0 0.0
    %1154 = vmatpush1.msra.mxu0 0.0
    %1155 = vmatprep.subr.mxu0 0.0
    %1156 = vmatpush1.msra.mxu0 0.0
    %1157 = vmatprep.subr.mxu0 0.0
    %1158 = vmatpush1.msra.mxu0 0.0
    %1159 = vmatprep.subr.mxu0 0.0
    %1160 = vmatpush1.msra.mxu0 0.0
    %1161 = vmatprep.subr.mxu0 0.0
    %1162 = vmatpush1.msra.mxu0 0.0
    %1163 = vmatprep.subr.mxu0 0.0
    %1164 = vmatpush1.msra.mxu0 0.0
    %1165 = vmatprep.subr.mxu0 0.0
    %1166 = vmatpush1.msra.mxu0 0.0
    %1167 = vmatprep.subr.mxu0 0.0
    %1168 = vmatpush1.msra.mxu0 0.0
    %1169 = vmatprep.subr.mxu0 0.0
    %1170 = vmatpush1.msra.mxu0 0.0
    %1171 = vmatprep.subr.mxu0 0.0
    %1172 = vmatpush1.msra.mxu0 0.0
    %1173 = vmatprep.subr.mxu0 0.0
    %1174 = vmatpush1.msra.mxu0 0.0
    %1175 = vmatprep.subr.mxu0 0.0
    %1176 = vmatpush1.msra.mxu0 0.0
    %1177 = vmatprep.subr.mxu0 0.0
    %1178 = vmatpush1.msra.mxu0 0.0
    %1179 = vmatprep.subr.mxu0 0.0
    %1180 = vmatpush1.msra.mxu0 0.0
    %1181 = vmatprep.subr.mxu0 0.0
    %1182 = vmatpush1.msra.mxu0 0.0
    %1183 = vmatprep.subr.mxu0 0.0
    %1184 = vmatpush1.msra.mxu0 0.0
    %1185 = vmatprep.subr.mxu0 0.0
    %1186 = vmatpush1.msra.mxu0 0.0
    %1187 = vmatprep.subr.mxu0 0.0
    %1188 = vmatpush1.msra.mxu0 0.0
    %1189 = vmatprep.subr.mxu0 0.0
    %1190 = vmatpush1.msra.mxu0 0.0
    %1191 = vmatprep.subr.mxu0 0.0
    %1192 = vmatpush1.msra.mxu0 0.0
    %1193 = vmatprep.subr.mxu0 0.0
    %1194 = vmatpush1.msra.mxu0 0.0
    %1195 = vmatprep.subr.mxu0 0.0
    %1196 = vmatpush1.msra.mxu0 0.0
    %1197 = vmatprep.subr.mxu0 0.0
    %1198 = vmatpush1.msra.mxu0 0.0
    %1199 = vmatprep.subr.mxu0 0.0
    %1200 = vmatpush1.msra.mxu0 0.0
    %1201 = vmatprep.subr.mxu0 0.0
    %1202 = vmatpush1.msra.mxu0 0.0
    %1203 = vmatprep.subr.mxu0 0.0
    %1204 = vmatpush1.msra.mxu0 0.0
    %1205 = vmatprep.subr.mxu0 0.0
    %1206 = vmatpush1.msra.mxu0 0.0
    %1207 = vmatprep.subr.mxu0 0.0
    %1208 = vmatpush1.msra.mxu0 0.0
    %1209 = vmatprep.mubr.f32.mxu0 0.0
    %1210 = vmatmul.mubr.f32.gmra.mrb[0].mxu0 %v1141
    %v1211 = vpop.f32.mrb[0].mxu0
    %v1212 = vadd.f32 0.0, %v1211
    %v1213 = vpop.f32.mrb[0].mxu0
    %1214 = vdwg.mxu0
    %1215 = vxpose.xlu0.b32.start [1/16] %v678, 128
    %1216 = vxpose.xlu0.b32.cont [2/16] 0.0, 128
    %1217 = vxpose.xlu0.b32.cont [3/16] 0.0, 128
    %1218 = vxpose.xlu0.b32.cont [4/16] 0.0, 128
    %1219 = vxpose.xlu0.b32.cont [5/16] 0.0, 128
    %1220 = vxpose.xlu0.b32.cont [6/16] 0.0, 128
    %1221 = vxpose.xlu0.b32.cont [7/16] 0.0, 128
    %1222 = vxpose.xlu0.b32.cont [8/16] 0.0, 128
    %1223 = vxpose.xlu0.b32.cont [9/16] 0.0, 128
    %1224 = vxpose.xlu0.b32.cont [10/16] 0.0, 128
    %1225 = vxpose.xlu0.b32.cont [11/16] 0.0, 128
    %1226 = vxpose.xlu0.b32.cont [12/16] 0.0, 128
    %1227 = vxpose.xlu0.b32.cont [13/16] 0.0, 128
    %1228 = vxpose.xlu0.b32.cont [14/16] 0.0, 128
    %1229 = vxpose.xlu0.b32.cont [15/16] 0.0, 128
    %1230 = vxpose.xlu0.b32.end [16/16] 0.0, 128
    %v1231 = vpop.trf.xlu0
    %v1232 = vpop.trf.xlu0
    %v1233 = vpop.trf.xlu0
    %v1234 = vpop.trf.xlu0
    %v1235 = vpop.trf.xlu0
    %v1236 = vpop.trf.xlu0
    %v1237 = vpop.trf.xlu0
    %v1238 = vpop.trf.xlu0
    %v1239 = vpop.trf.xlu0
    %v1240 = vpop.trf.xlu0
    %v1241 = vpop.trf.xlu0
    %v1242 = vpop.trf.xlu0
    %v1243 = vpop.trf.xlu0
    %v1244 = vpop.trf.xlu0
    %v1245 = vpop.trf.xlu0
    %v1246 = vpop.trf.xlu0
    %v1248 = vsel %vm711, %v1231, 0
    %v1250 = vsel %vm540, %v57, 0
    %1252 = vmatprep.subr.mxu0 0.0
    %1253 = vmatpush1.msra.mxu0 %v1250
    %1254 = vmatprep.subr.mxu0 0.0
    %1255 = vmatpush1.msra.mxu0 0.0
    %1256 = vmatprep.subr.mxu0 0.0
    %1257 = vmatpush1.msra.mxu0 0.0
    %1258 = vmatprep.subr.mxu0 0.0
    %1259 = vmatpush1.msra.mxu0 0.0
    %1260 = vmatprep.subr.mxu0 0.0
    %1261 = vmatpush1.msra.mxu0 0.0
    %1262 = vmatprep.subr.mxu0 0.0
    %1263 = vmatpush1.msra.mxu0 0.0
    %1264 = vmatprep.subr.mxu0 0.0
    %1265 = vmatpush1.msra.mxu0 0.0
    %1266 = vmatprep.subr.mxu0 0.0
    %1267 = vmatpush1.msra.mxu0 0.0
    %1268 = vmatprep.subr.mxu0 0.0
    %1269 = vmatpush1.msra.mxu0 0.0
    %1270 = vmatprep.subr.mxu0 0.0
    %1271 = vmatpush1.msra.mxu0 0.0
    %1272 = vmatprep.subr.mxu0 0.0
    %1273 = vmatpush1.msra.mxu0 0.0
    %1274 = vmatprep.subr.mxu0 0.0
    %1275 = vmatpush1.msra.mxu0 0.0
    %1276 = vmatprep.subr.mxu0 0.0
    %1277 = vmatpush1.msra.mxu0 0.0
    %1278 = vmatprep.subr.mxu0 0.0
    %1279 = vmatpush1.msra.mxu0 0.0
    %1280 = vmatprep.subr.mxu0 0.0
    %1281 = vmatpush1.msra.mxu0 0.0
    %1282 = vmatprep.subr.mxu0 0.0
    %1283 = vmatpush1.msra.mxu0 0.0
    %1284 = vmatprep.subr.mxu0 0.0
    %1285 = vmatpush1.msra.mxu0 0.0
    %1286 = vmatprep.subr.mxu0 0.0
    %1287 = vmatpush1.msra.mxu0 0.0
    %1288 = vmatprep.subr.mxu0 0.0
    %1289 = vmatpush1.msra.mxu0 0.0
    %1290 = vmatprep.subr.mxu0 0.0
    %1291 = vmatpush1.msra.mxu0 0.0
    %1292 = vmatprep.subr.mxu0 0.0
    %1293 = vmatpush1.msra.mxu0 0.0
    %1294 = vmatprep.subr.mxu0 0.0
    %1295 = vmatpush1.msra.mxu0 0.0
    %1296 = vmatprep.subr.mxu0 0.0
    %1297 = vmatpush1.msra.mxu0 0.0
    %1298 = vmatprep.subr.mxu0 0.0
    %1299 = vmatpush1.msra.mxu0 0.0
    %1300 = vmatprep.subr.mxu0 0.0
    %1301 = vmatpush1.msra.mxu0 0.0
    %1302 = vmatprep.subr.mxu0 0.0
    %1303 = vmatpush1.msra.mxu0 0.0
    %1304 = vmatprep.subr.mxu0 0.0
    %1305 = vmatpush1.msra.mxu0 0.0
    %1306 = vmatprep.subr.mxu0 0.0
    %1307 = vmatpush1.msra.mxu0 0.0
    %1308 = vmatprep.subr.mxu0 0.0
    %1309 = vmatpush1.msra.mxu0 0.0
    %1310 = vmatprep.subr.mxu0 0.0
    %1311 = vmatpush1.msra.mxu0 0.0
    %1312 = vmatprep.subr.mxu0 0.0
    %1313 = vmatpush1.msra.mxu0 0.0
    %1314 = vmatprep.subr.mxu0 0.0
    %1315 = vmatpush1.msra.mxu0 0.0
    %1316 = vmatprep.mubr.f32.mxu0 0.0
    %1317 = vmatmul.mubr.f32.gmra.mrb[0].mxu0 %v1248
    %v1318 = vpop.f32.mrb[0].mxu0
    %v1319 = vadd.f32 0.0, %v1318
    %v1320 = vpop.f32.mrb[0].mxu0
    %1321 = vdwg.mxu0
    %v1322 = vadd.f32 %v46, %v784
    %v1323 = vadd.f32 %v47, %v891
    %v1324 = vadd.f32 %v48, %v998
    %v1325 = vadd.f32 %v49, %v1105
    %v1326 = vadd.f32 %v50, %v1212
    %v1327 = vadd.f32 %v51, %v1319
    %vm1328 = vcmask 64512
    %v1330 = vsel %vm1328, %v625, 0
    %1332 = vmatprep.subr.mxu0 0.0
    %1333 = vmatpush1.msra.mxu0 %v46
    %1334 = vmatprep.subr.mxu0 0.0
    %1335 = vmatpush1.msra.mxu0 0.0
    %1336 = vmatprep.subr.mxu0 0.0
    %1337 = vmatpush1.msra.mxu0 0.0
    %1338 = vmatprep.subr.mxu0 0.0
    %1339 = vmatpush1.msra.mxu0 0.0
    %1340 = vmatprep.subr.mxu0 0.0
    %1341 = vmatpush1.msra.mxu0 0.0
    %1342 = vmatprep.subr.mxu0 0.0
    %1343 = vmatpush1.msra.mxu0 0.0
    %1344 = vmatprep.subr.mxu0 0.0
    %1345 = vmatpush1.msra.mxu0 0.0
    %1346 = vmatprep.subr.mxu0 0.0
    %1347 = vmatpush1.msra.mxu0 0.0
    %1348 = vmatprep.subr.mxu0 0.0
    %1349 = vmatpush1.msra.mxu0 0.0
    %1350 = vmatprep.subr.mxu0 0.0
    %1351 = vmatpush1.msra.mxu0 0.0
    %1352 = vmatprep.subr.mxu0 0.0
    %1353 = vmatpush1.msra.mxu0 0.0
    %1354 = vmatprep.subr.mxu0 0.0
    %1355 = vmatpush1.msra.mxu0 0.0
    %1356 = vmatprep.subr.mxu0 0.0
    %1357 = vmatpush1.msra.mxu0 0.0
    %1358 = vmatprep.subr.mxu0 0.0
    %1359 = vmatpush1.msra.mxu0 0.0
    %1360 = vmatprep.subr.mxu0 0.0
    %1361 = vmatpush1.msra.mxu0 0.0
    %1362 = vmatprep.subr.mxu0 0.0
    %1363 = vmatpush1.msra.mxu0 0.0
    %1364 = vmatprep.subr.mxu0 0.0
    %1365 = vmatpush1.msra.mxu0 0.0
    %1366 = vmatprep.subr.mxu0 0.0
    %1367 = vmatpush1.msra.mxu0 0.0
    %1368 = vmatprep.subr.mxu0 0.0
    %1369 = vmatpush1.msra.mxu0 0.0
    %1370 = vmatprep.subr.mxu0 0.0
    %1371 = vmatpush1.msra.mxu0 0.0
    %1372 = vmatprep.subr.mxu0 0.0
    %1373 = vmatpush1.msra.mxu0 0.0
    %1374 = vmatprep.subr.mxu0 0.0
    %1375 = vmatpush1.msra.mxu0 0.0
    %1376 = vmatprep.subr.mxu0 0.0
    %1377 = vmatpush1.msra.mxu0 0.0
    %1378 = vmatprep.subr.mxu0 0.0
    %1379 = vmatpush1.msra.mxu0 0.0
    %1380 = vmatprep.subr.mxu0 0.0
    %1381 = vmatpush1.msra.mxu0 0.0
    %1382 = vmatprep.subr.mxu0 0.0
    %1383 = vmatpush1.msra.mxu0 0.0
    %1384 = vmatprep.subr.mxu0 0.0
    %1385 = vmatpush1.msra.mxu0 0.0
    %1386 = vmatprep.subr.mxu0 0.0
    %1387 = vmatpush1.msra.mxu0 0.0
    %1388 = vmatprep.subr.mxu0 0.0
    %1389 = vmatpush1.msra.mxu0 0.0
    %1390 = vmatprep.subr.mxu0 0.0
    %1391 = vmatpush1.msra.mxu0 0.0
    %1392 = vmatprep.subr.mxu0 0.0
    %1393 = vmatpush1.msra.mxu0 0.0
    %1394 = vmatprep.subr.mxu0 0.0
    %1395 = vmatpush1.msra.mxu0 0.0
    %1396 = vmatprep.mubr.f32.mxu0 0.0
    %1397 = vmatmul.mubr.f32.gmra.mrb[0].mxu0 %v1330
    %v1398 = vpop.f32.mrb[0].mxu0
    %v1399 = vadd.f32 0.0, %v1398
    %v1400 = vpop.f32.mrb[0].mxu0
    %1401 = vdwg.mxu0
    %v1403 = vsel %vm1328, %v626, 0
    %1405 = vmatprep.subr.mxu0 0.0
    %1406 = vmatpush1.msra.mxu0 %v47
    %1407 = vmatprep.subr.mxu0 0.0
    %1408 = vmatpush1.msra.mxu0 0.0
    %1409 = vmatprep.subr.mxu0 0.0
    %1410 = vmatpush1.msra.mxu0 0.0
    %1411 = vmatprep.subr.mxu0 0.0
    %1412 = vmatpush1.msra.mxu0 0.0
    %1413 = vmatprep.subr.mxu0 0.0
    %1414 = vmatpush1.msra.mxu0 0.0
    %1415 = vmatprep.subr.mxu0 0.0
    %1416 = vmatpush1.msra.mxu0 0.0
    %1417 = vmatprep.subr.mxu0 0.0
    %1418 = vmatpush1.msra.mxu0 0.0
    %1419 = vmatprep.subr.mxu0 0.0
    %1420 = vmatpush1.msra.mxu0 0.0
    %1421 = vmatprep.subr.mxu0 0.0
    %1422 = vmatpush1.msra.mxu0 0.0
    %1423 = vmatprep.subr.mxu0 0.0
    %1424 = vmatpush1.msra.mxu0 0.0
    %1425 = vmatprep.subr.mxu0 0.0
    %1426 = vmatpush1.msra.mxu0 0.0
    %1427 = vmatprep.subr.mxu0 0.0
    %1428 = vmatpush1.msra.mxu0 0.0
    %1429 = vmatprep.subr.mxu0 0.0
    %1430 = vmatpush1.msra.mxu0 0.0
    %1431 = vmatprep.subr.mxu0 0.0
    %1432 = vmatpush1.msra.mxu0 0.0
    %1433 = vmatprep.subr.mxu0 0.0
    %1434 = vmatpush1.msra.mxu0 0.0
    %1435 = vmatprep.subr.mxu0 0.0
    %1436 = vmatpush1.msra.mxu0 0.0
    %1437 = vmatprep.subr.mxu0 0.0
    %1438 = vmatpush1.msra.mxu0 0.0
    %1439 = vmatprep.subr.mxu0 0.0
    %1440 = vmatpush1.msra.mxu0 0.0
    %1441 = vmatprep.subr.mxu0 0.0
    %1442 = vmatpush1.msra.mxu0 0.0
    %1443 = vmatprep.subr.mxu0 0.0
    %1444 = vmatpush1.msra.mxu0 0.0
    %1445 = vmatprep.subr.mxu0 0.0
    %1446 = vmatpush1.msra.mxu0 0.0
    %1447 = vmatprep.subr.mxu0 0.0
    %1448 = vmatpush1.msra.mxu0 0.0
    %1449 = vmatprep.subr.mxu0 0.0
    %1450 = vmatpush1.msra.mxu0 0.0
    %1451 = vmatprep.subr.mxu0 0.0
    %1452 = vmatpush1.msra.mxu0 0.0
    %1453 = vmatprep.subr.mxu0 0.0
    %1454 = vmatpush1.msra.mxu0 0.0
    %1455 = vmatprep.subr.mxu0 0.0
    %1456 = vmatpush1.msra.mxu0 0.0
    %1457 = vmatprep.subr.mxu0 0.0
    %1458 = vmatpush1.msra.mxu0 0.0
    %1459 = vmatprep.subr.mxu0 0.0
    %1460 = vmatpush1.msra.mxu0 0.0
    %1461 = vmatprep.subr.mxu0 0.0
    %1462 = vmatpush1.msra.mxu0 0.0
    %1463 = vmatprep.subr.mxu0 0.0
    %1464 = vmatpush1.msra.mxu0 0.0
    %1465 = vmatprep.subr.mxu0 0.0
    %1466 = vmatpush1.msra.mxu0 0.0
    %1467 = vmatprep.subr.mxu0 0.0
    %1468 = vmatpush1.msra.mxu0 0.0
    %1469 = vmatprep.mubr.f32.mxu0 0.0
    %1470 = vmatmul.mubr.f32.gmra.mrb[0].mxu0 %v1403
    %v1471 = vpop.f32.mrb[0].mxu0
    %v1472 = vadd.f32 0.0, %v1471
    %v1473 = vpop.f32.mrb[0].mxu0
    %1474 = vdwg.mxu0
    %v1476 = vsel %vm1328, %v627, 0
    %1478 = vmatprep.subr.mxu0 0.0
    %1479 = vmatpush1.msra.mxu0 %v48
    %1480 = vmatprep.subr.mxu0 0.0
    %1481 = vmatpush1.msra.mxu0 0.0
    %1482 = vmatprep.subr.mxu0 0.0
    %1483 = vmatpush1.msra.mxu0 0.0
    %1484 = vmatprep.subr.mxu0 0.0
    %1485 = vmatpush1.msra.mxu0 0.0
    %1486 = vmatprep.subr.mxu0 0.0
    %1487 = vmatpush1.msra.mxu0 0.0
    %1488 = vmatprep.subr.mxu0 0.0
    %1489 = vmatpush1.msra.mxu0 0.0
    %1490 = vmatprep.subr.mxu0 0.0
    %1491 = vmatpush1.msra.mxu0 0.0
    %1492 = vmatprep.subr.mxu0 0.0
    %1493 = vmatpush1.msra.mxu0 0.0
    %1494 = vmatprep.subr.mxu0 0.0
    %1495 = vmatpush1.msra.mxu0 0.0
    %1496 = vmatprep.subr.mxu0 0.0
    %1497 = vmatpush1.msra.mxu0 0.0
    %1498 = vmatprep.subr.mxu0 0.0
    %1499 = vmatpush1.msra.mxu0 0.0
    %1500 = vmatprep.subr.mxu0 0.0
    %1501 = vmatpush1.msra.mxu0 0.0
    %1502 = vmatprep.subr.mxu0 0.0
    %1503 = vmatpush1.msra.mxu0 0.0
    %1504 = vmatprep.subr.mxu0 0.0
    %1505 = vmatpush1.msra.mxu0 0.0
    %1506 = vmatprep.subr.mxu0 0.0
    %1507 = vmatpush1.msra.mxu0 0.0
    %1508 = vmatprep.subr.mxu0 0.0
    %1509 = vmatpush1.msra.mxu0 0.0
    %1510 = vmatprep.subr.mxu0 0.0
    %1511 = vmatpush1.msra.mxu0 0.0
    %1512 = vmatprep.subr.mxu0 0.0
    %1513 = vmatpush1.msra.mxu0 0.0
    %1514 = vmatprep.subr.mxu0 0.0
    %1515 = vmatpush1.msra.mxu0 0.0
    %1516 = vmatprep.subr.mxu0 0.0
    %1517 = vmatpush1.msra.mxu0 0.0
    %1518 = vmatprep.subr.mxu0 0.0
    %1519 = vmatpush1.msra.mxu0 0.0
    %1520 = vmatprep.subr.mxu0 0.0
    %1521 = vmatpush1.msra.mxu0 0.0
    %1522 = vmatprep.subr.mxu0 0.0
    %1523 = vmatpush1.msra.mxu0 0.0
    %1524 = vmatprep.subr.mxu0 0.0
    %1525 = vmatpush1.msra.mxu0 0.0
    %1526 = vmatprep.subr.mxu0 0.0
    %1527 = vmatpush1.msra.mxu0 0.0
    %1528 = vmatprep.subr.mxu0 0.0
    %1529 = vmatpush1.msra.mxu0 0.0
    %1530 = vmatprep.subr.mxu0 0.0
    %1531 = vmatpush1.msra.mxu0 0.0
    %1532 = vmatprep.subr.mxu0 0.0
    %1533 = vmatpush1.msra.mxu0 0.0
    %1534 = vmatprep.subr.mxu0 0.0
    %1535 = vmatpush1.msra.mxu0 0.0
    %1536 = vmatprep.subr.mxu0 0.0
    %1537 = vmatpush1.msra.mxu0 0.0
    %1538 = vmatprep.subr.mxu0 0.0
    %1539 = vmatpush1.msra.mxu0 0.0
    %1540 = vmatprep.subr.mxu0 0.0
    %1541 = vmatpush1.msra.mxu0 0.0
    %1542 = vmatprep.mubr.f32.mxu0 0.0
    %1543 = vmatmul.mubr.f32.gmra.mrb[0].mxu0 %v1476
    %v1544 = vpop.f32.mrb[0].mxu0
    %v1545 = vadd.f32 0.0, %v1544
    %v1546 = vpop.f32.mrb[0].mxu0
    %1547 = vdwg.mxu0
    %v1549 = vsel %vm1328, %v628, 0
    %1551 = vmatprep.subr.mxu0 0.0
    %1552 = vmatpush1.msra.mxu0 %v49
    %1553 = vmatprep.subr.mxu0 0.0
    %1554 = vmatpush1.msra.mxu0 0.0
    %1555 = vmatprep.subr.mxu0 0.0
    %1556 = vmatpush1.msra.mxu0 0.0
    %1557 = vmatprep.subr.mxu0 0.0
    %1558 = vmatpush1.msra.mxu0 0.0
    %1559 = vmatprep.subr.mxu0 0.0
    %1560 = vmatpush1.msra.mxu0 0.0
    %1561 = vmatprep.subr.mxu0 0.0
    %1562 = vmatpush1.msra.mxu0 0.0
    %1563 = vmatprep.subr.mxu0 0.0
    %1564 = vmatpush1.msra.mxu0 0.0
    %1565 = vmatprep.subr.mxu0 0.0
    %1566 = vmatpush1.msra.mxu0 0.0
    %1567 = vmatprep.subr.mxu0 0.0
    %1568 = vmatpush1.msra.mxu0 0.0
    %1569 = vmatprep.subr.mxu0 0.0
    %1570 = vmatpush1.msra.mxu0 0.0
    %1571 = vmatprep.subr.mxu0 0.0
    %1572 = vmatpush1.msra.mxu0 0.0
    %1573 = vmatprep.subr.mxu0 0.0
    %1574 = vmatpush1.msra.mxu0 0.0
    %1575 = vmatprep.subr.mxu0 0.0
    %1576 = vmatpush1.msra.mxu0 0.0
    %1577 = vmatprep.subr.mxu0 0.0
    %1578 = vmatpush1.msra.mxu0 0.0
    %1579 = vmatprep.subr.mxu0 0.0
    %1580 = vmatpush1.msra.mxu0 0.0
    %1581 = vmatprep.subr.mxu0 0.0
    %1582 = vmatpush1.msra.mxu0 0.0
    %1583 = vmatprep.subr.mxu0 0.0
    %1584 = vmatpush1.msra.mxu0 0.0
    %1585 = vmatprep.subr.mxu0 0.0
    %1586 = vmatpush1.msra.mxu0 0.0
    %1587 = vmatprep.subr.mxu0 0.0
    %1588 = vmatpush1.msra.mxu0 0.0
    %1589 = vmatprep.subr.mxu0 0.0
    %1590 = vmatpush1.msra.mxu0 0.0
    %1591 = vmatprep.subr.mxu0 0.0
    %1592 = vmatpush1.msra.mxu0 0.0
    %1593 = vmatprep.subr.mxu0 0.0
    %1594 = vmatpush1.msra.mxu0 0.0
    %1595 = vmatprep.subr.mxu0 0.0
    %1596 = vmatpush1.msra.mxu0 0.0
    %1597 = vmatprep.subr.mxu0 0.0
    %1598 = vmatpush1.msra.mxu0 0.0
    %1599 = vmatprep.subr.mxu0 0.0
    %1600 = vmatpush1.msra.mxu0 0.0
    %1601 = vmatprep.subr.mxu0 0.0
    %1602 = vmatpush1.msra.mxu0 0.0
    %1603 = vmatprep.subr.mxu0 0.0
    %1604 = vmatpush1.msra.mxu0 0.0
    %1605 = vmatprep.subr.mxu0 0.0
    %1606 = vmatpush1.msra.mxu0 0.0
    %1607 = vmatprep.subr.mxu0 0.0
    %1608 = vmatpush1.msra.mxu0 0.0
    %1609 = vmatprep.subr.mxu0 0.0
    %1610 = vmatpush1.msra.mxu0 0.0
    %1611 = vmatprep.subr.mxu0 0.0
    %1612 = vmatpush1.msra.mxu0 0.0
    %1613 = vmatprep.subr.mxu0 0.0
    %1614 = vmatpush1.msra.mxu0 0.0
    %1615 = vmatprep.mubr.f32.mxu0 0.0
    %1616 = vmatmul.mubr.f32.gmra.mrb[0].mxu0 %v1549
    %v1617 = vpop.f32.mrb[0].mxu0
    %v1618 = vadd.f32 0.0, %v1617
    %v1619 = vpop.f32.mrb[0].mxu0
    %1620 = vdwg.mxu0
    %v1622 = vsel %vm1328, %v629, 0
    %1624 = vmatprep.subr.mxu0 0.0
    %1625 = vmatpush1.msra.mxu0 %v50
    %1626 = vmatprep.subr.mxu0 0.0
    %1627 = vmatpush1.msra.mxu0 0.0
    %1628 = vmatprep.subr.mxu0 0.0
    %1629 = vmatpush1.msra.mxu0 0.0
    %1630 = vmatprep.subr.mxu0 0.0
    %1631 = vmatpush1.msra.mxu0 0.0
    %1632 = vmatprep.subr.mxu0 0.0
    %1633 = vmatpush1.msra.mxu0 0.0
    %1634 = vmatprep.subr.mxu0 0.0
    %1635 = vmatpush1.msra.mxu0 0.0
    %1636 = vmatprep.subr.mxu0 0.0
    %1637 = vmatpush1.msra.mxu0 0.0
    %1638 = vmatprep.subr.mxu0 0.0
    %1639 = vmatpush1.msra.mxu0 0.0
    %1640 = vmatprep.subr.mxu0 0.0
    %1641 = vmatpush1.msra.mxu0 0.0
    %1642 = vmatprep.subr.mxu0 0.0
    %1643 = vmatpush1.msra.mxu0 0.0
    %1644 = vmatprep.subr.mxu0 0.0
    %1645 = vmatpush1.msra.mxu0 0.0
    %1646 = vmatprep.subr.mxu0 0.0
    %1647 = vmatpush1.msra.mxu0 0.0
    %1648 = vmatprep.subr.mxu0 0.0
    %1649 = vmatpush1.msra.mxu0 0.0
    %1650 = vmatprep.subr.mxu0 0.0
    %1651 = vmatpush1.msra.mxu0 0.0
    %1652 = vmatprep.subr.mxu0 0.0
    %1653 = vmatpush1.msra.mxu0 0.0
    %1654 = vmatprep.subr.mxu0 0.0
    %1655 = vmatpush1.msra.mxu0 0.0
    %1656 = vmatprep.subr.mxu0 0.0
    %1657 = vmatpush1.msra.mxu0 0.0
    %1658 = vmatprep.subr.mxu0 0.0
    %1659 = vmatpush1.msra.mxu0 0.0
    %1660 = vmatprep.subr.mxu0 0.0
    %1661 = vmatpush1.msra.mxu0 0.0
    %1662 = vmatprep.subr.mxu0 0.0
    %1663 = vmatpush1.msra.mxu0 0.0
    %1664 = vmatprep.subr.mxu0 0.0
    %1665 = vmatpush1.msra.mxu0 0.0
    %1666 = vmatprep.subr.mxu0 0.0
    %1667 = vmatpush1.msra.mxu0 0.0
    %1668 = vmatprep.subr.mxu0 0.0
    %1669 = vmatpush1.msra.mxu0 0.0
    %1670 = vmatprep.subr.mxu0 0.0
    %1671 = vmatpush1.msra.mxu0 0.0
    %1672 = vmatprep.subr.mxu0 0.0
    %1673 = vmatpush1.msra.mxu0 0.0
    %1674 = vmatprep.subr.mxu0 0.0
    %1675 = vmatpush1.msra.mxu0 0.0
    %1676 = vmatprep.subr.mxu0 0.0
    %1677 = vmatpush1.msra.mxu0 0.0
    %1678 = vmatprep.subr.mxu0 0.0
    %1679 = vmatpush1.msra.mxu0 0.0
    %1680 = vmatprep.subr.mxu0 0.0
    %1681 = vmatpush1.msra.mxu0 0.0
    %1682 = vmatprep.subr.mxu0 0.0
    %1683 = vmatpush1.msra.mxu0 0.0
    %1684 = vmatprep.subr.mxu0 0.0
    %1685 = vmatpush1.msra.mxu0 0.0
    %1686 = vmatprep.subr.mxu0 0.0
    %1687 = vmatpush1.msra.mxu0 0.0
    %1688 = vmatprep.mubr.f32.mxu0 0.0
    %1689 = vmatmul.mubr.f32.gmra.mrb[0].mxu0 %v1622
    %v1690 = vpop.f32.mrb[0].mxu0
    %v1691 = vadd.f32 0.0, %v1690
    %v1692 = vpop.f32.mrb[0].mxu0
    %1693 = vdwg.mxu0
    %v1695 = vsel %vm1328, %v630, 0
    %1697 = vmatprep.subr.mxu0 0.0
    %1698 = vmatpush1.msra.mxu0 %v51
    %1699 = vmatprep.subr.mxu0 0.0
    %1700 = vmatpush1.msra.mxu0 0.0
    %1701 = vmatprep.subr.mxu0 0.0
    %1702 = vmatpush1.msra.mxu0 0.0
    %1703 = vmatprep.subr.mxu0 0.0
    %1704 = vmatpush1.msra.mxu0 0.0
    %1705 = vmatprep.subr.mxu0 0.0
    %1706 = vmatpush1.msra.mxu0 0.0
    %1707 = vmatprep.subr.mxu0 0.0
    %1708 = vmatpush1.msra.mxu0 0.0
    %1709 = vmatprep.subr.mxu0 0.0
    %1710 = vmatpush1.msra.mxu0 0.0
    %1711 = vmatprep.subr.mxu0 0.0
    %1712 = vmatpush1.msra.mxu0 0.0
    %1713 = vmatprep.subr.mxu0 0.0
    %1714 = vmatpush1.msra.mxu0 0.0
    %1715 = vmatprep.subr.mxu0 0.0
    %1716 = vmatpush1.msra.mxu0 0.0
    %1717 = vmatprep.subr.mxu0 0.0
    %1718 = vmatpush1.msra.mxu0 0.0
    %1719 = vmatprep.subr.mxu0 0.0
    %1720 = vmatpush1.msra.mxu0 0.0
    %1721 = vmatprep.subr.mxu0 0.0
    %1722 = vmatpush1.msra.mxu0 0.0
    %1723 = vmatprep.subr.mxu0 0.0
    %1724 = vmatpush1.msra.mxu0 0.0
    %1725 = vmatprep.subr.mxu0 0.0
    %1726 = vmatpush1.msra.mxu0 0.0
    %1727 = vmatprep.subr.mxu0 0.0
    %1728 = vmatpush1.msra.mxu0 0.0
    %1729 = vmatprep.subr.mxu0 0.0
    %1730 = vmatpush1.msra.mxu0 0.0
    %1731 = vmatprep.subr.mxu0 0.0
    %1732 = vmatpush1.msra.mxu0 0.0
    %1733 = vmatprep.subr.mxu0 0.0
    %1734 = vmatpush1.msra.mxu0 0.0
    %1735 = vmatprep.subr.mxu0 0.0
    %1736 = vmatpush1.msra.mxu0 0.0
    %1737 = vmatprep.subr.mxu0 0.0
    %1738 = vmatpush1.msra.mxu0 0.0
    %1739 = vmatprep.subr.mxu0 0.0
    %1740 = vmatpush1.msra.mxu0 0.0
    %1741 = vmatprep.subr.mxu0 0.0
    %1742 = vmatpush1.msra.mxu0 0.0
    %1743 = vmatprep.subr.mxu0 0.0
    %1744 = vmatpush1.msra.mxu0 0.0
    %1745 = vmatprep.subr.mxu0 0.0
    %1746 = vmatpush1.msra.mxu0 0.0
    %1747 = vmatprep.subr.mxu0 0.0
    %1748 = vmatpush1.msra.mxu0 0.0
    %1749 = vmatprep.subr.mxu0 0.0
    %1750 = vmatpush1.msra.mxu0 0.0
    %1751 = vmatprep.subr.mxu0 0.0
    %1752 = vmatpush1.msra.mxu0 0.0
    %1753 = vmatprep.subr.mxu0 0.0
    %1754 = vmatpush1.msra.mxu0 0.0
    %1755 = vmatprep.subr.mxu0 0.0
    %1756 = vmatpush1.msra.mxu0 0.0
    %1757 = vmatprep.subr.mxu0 0.0
    %1758 = vmatpush1.msra.mxu0 0.0
    %1759 = vmatprep.subr.mxu0 0.0
    %1760 = vmatpush1.msra.mxu0 0.0
    %1761 = vmatprep.mubr.f32.mxu0 0.0
    %1762 = vmatmul.mubr.f32.gmra.mrb[0].mxu0 %v1695
    %v1763 = vpop.f32.mrb[0].mxu0
    %v1764 = vadd.f32 0.0, %v1763
    %v1765 = vpop.f32.mrb[0].mxu0
    %1766 = vdwg.mxu0
    %v1767 = vadd.f32 %v52, %v1399
    %v1768 = vadd.f32 %v53, %v1472
    %v1769 = vadd.f32 %v54, %v1545
    %v1770 = vadd.f32 %v55, %v1618
    %v1771 = vadd.f32 %v56, %v1691
    %v1772 = vadd.f32 %v57, %v1764
    %v1773 = vsel %vm58, %v1322, 0.0
    %1774 = vadd.xlane.f32.xlu0 %v1773
    %v1775 = vpop.xlane.xlu0 %1774
    %v1776 = vsel %vm58, %v1323, 0.0
    %1777 = vadd.xlane.f32.xlu0 %v1776
    %v1778 = vpop.xlane.xlu0 %1777
    %v1779 = vsel %vm58, %v1324, 0.0
    %1780 = vadd.xlane.f32.xlu0 %v1779
    %v1781 = vpop.xlane.xlu0 %1780
    %v1782 = vsel %vm58, %v1325, 0.0
    %1783 = vadd.xlane.f32.xlu0 %v1782
    %v1784 = vpop.xlane.xlu0 %1783
    %v1785 = vsel %vm58, %v1326, 0.0
    %1786 = vadd.xlane.f32.xlu0 %v1785
    %v1787 = vpop.xlane.xlu0 %1786
    %v1788 = vsel %vm58, %v1327, 0.0
    %1789 = vadd.xlane.f32.xlu0 %v1788
    %v1790 = vpop.xlane.xlu0 %1789
    %v1791 = vmul.f32 %v1775, 0.03125
    %v1792 = vmul.f32 %v1778, 0.03125
    %v1793 = vmul.f32 %v1781, 0.03125
    %v1794 = vmul.f32 %v1784, 0.03125
    %v1795 = vmul.f32 %v1787, 0.03125
    %v1796 = vmul.f32 %v1790, 0.03125
    %v1797 = vsub.f32 %v1322, %v1791
    %v1798 = vsub.f32 %v1323, %v1792
    %v1799 = vsub.f32 %v1324, %v1793
    %v1800 = vsub.f32 %v1325, %v1794
    %v1801 = vsub.f32 %v1326, %v1795
    %v1802 = vsub.f32 %v1327, %v1796
    %v1803 = vmul.f32 %v1797, %v1797
    %v1804 = vmul.f32 %v1798, %v1798
    %v1805 = vmul.f32 %v1799, %v1799
    %v1806 = vmul.f32 %v1800, %v1800
    %v1807 = vmul.f32 %v1801, %v1801
    %v1808 = vmul.f32 %v1802, %v1802
    %v1809 = vsel %vm58, %v1803, 0.0
    %1810 = vadd.xlane.f32.xlu0 %v1809
    %v1811 = vpop.xlane.xlu0 %1810
    %v1812 = vsel %vm58, %v1804, 0.0
    %1813 = vadd.xlane.f32.xlu0 %v1812
    %v1814 = vpop.xlane.xlu0 %1813
    %v1815 = vsel %vm58, %v1805, 0.0
    %1816 = vadd.xlane.f32.xlu0 %v1815
    %v1817 = vpop.xlane.xlu0 %1816
    %v1818 = vsel %vm58, %v1806, 0.0
    %1819 = vadd.xlane.f32.xlu0 %v1818
    %v1820 = vpop.xlane.xlu0 %1819
    %v1821 = vsel %vm58, %v1807, 0.0
    %1822 = vadd.xlane.f32.xlu0 %v1821
    %v1823 = vpop.xlane.xlu0 %1822
    %v1824 = vsel %vm58, %v1808, 0.0
    %1825 = vadd.xlane.f32.xlu0 %v1824
    %v1826 = vpop.xlane.xlu0 %1825
    %v1827 = vmul.f32 %v1811, 0.03125
    %v1828 = vmul.f32 %v1814, 0.03125
    %v1829 = vmul.f32 %v1817, 0.03125
    %v1830 = vmul.f32 %v1820, 0.03125
    %v1831 = vmul.f32 %v1823, 0.03125
    %v1832 = vmul.f32 %v1826, 0.03125
    %v1833 = vadd.f32 %v1827, 1e-12
    %v1834 = vadd.f32 %v1828, 1e-12
    %v1835 = vadd.f32 %v1829, 1e-12
    %v1836 = vadd.f32 %v1830, 1e-12
    %v1837 = vadd.f32 %v1831, 1e-12
    %v1838 = vadd.f32 %v1832, 1e-12
    %v1839 = vrsqrt.pop %v1833
    %v1840 = vrsqrt.pop %v1834
    %v1841 = vrsqrt.pop %v1835
    %v1842 = vrsqrt.pop %v1836
    %v1843 = vrsqrt.pop %v1837
    %v1844 = vrsqrt.pop %v1838
    %v1845 = vmul.f32 %v1797, %v1839
    %v1846 = vmul.f32 %v1798, %v1840
    %v1847 = vmul.f32 %v1799, %v1841
    %v1848 = vmul.f32 %v1800, %v1842
    %v1849 = vmul.f32 %v1801, %v1843
    %v1850 = vmul.f32 %v1802, %v1844
    %v1851 = vsel %vm58, %v1845, 0.0
    %v1852 = vrot.slane %v1851, 4
    %v1853 = vadd.f32 %v1851, %v1852
    %v1854 = vrot.slane %v1853, 2
    %v1855 = vadd.f32 %v1853, %v1854
    %v1856 = vrot.slane %v1855, 1
    %v1857 = vadd.f32 %v1855, %v1856
    %v1858 = vsel %vm58, %v1846, 0.0
    %v1859 = vrot.slane %v1858, 4
    %v1860 = vadd.f32 %v1858, %v1859
    %v1861 = vrot.slane %v1860, 2
    %v1862 = vadd.f32 %v1860, %v1861
    %v1863 = vrot.slane %v1862, 1
    %v1864 = vadd.f32 %v1862, %v1863
    %v1865 = vsel %vm58, %v1847, 0.0
    %v1866 = vrot.slane %v1865, 4
    %v1867 = vadd.f32 %v1865, %v1866
    %v1868 = vrot.slane %v1867, 2
    %v1869 = vadd.f32 %v1867, %v1868
    %v1870 = vrot.slane %v1869, 1
    %v1871 = vadd.f32 %v1869, %v1870
    %v1872 = vsel %vm58, %v1848, 0.0
    %v1873 = vrot.slane %v1872, 4
    %v1874 = vadd.f32 %v1872, %v1873
    %v1875 = vrot.slane %v1874, 2
    %v1876 = vadd.f32 %v1874, %v1875
    %v1877 = vrot.slane %v1876, 1
    %v1878 = vadd.f32 %v1876, %v1877
    %v1879 = vsel %vm58, %v1849, 0.0
    %v1880 = vrot.slane %v1879, 4
    %v1881 = vadd.f32 %v1879, %v1880
    %v1882 = vrot.slane %v1881, 2
    %v1883 = vadd.f32 %v1881, %v1882
    %v1884 = vrot.slane %v1883, 1
    %v1885 = vadd.f32 %v1883, %v1884
    %v1886 = vsel %vm58, %v1850, 0.0
    %v1887 = vrot.slane %v1886, 4
    %v1888 = vadd.f32 %v1886, %v1887
    %v1889 = vrot.slane %v1888, 2
    %v1890 = vadd.f32 %v1888, %v1889
    %v1891 = vrot.slane %v1890, 1
    %v1892 = vadd.f32 %v1890, %v1891
    %v1893 = vmul.f32 %v1857, 0.125
    %v1894 = vmul.f32 %v1864, 0.125
    %v1895 = vmul.f32 %v1871, 0.125
    %v1896 = vmul.f32 %v1878, 0.125
    %v1897 = vmul.f32 %v1885, 0.125
    %v1898 = vmul.f32 %v1892, 0.125
    %vm1899 = vcmask 257024
    %v1900 = vsel %vm1899, %v1767, 0.0
    %1901 = vadd.xlane.f32.xlu0 %v1900
    %v1902 = vpop.xlane.xlu0 %1901
    %v1903 = vsel %vm1899, %v1768, 0.0
    %1904 = vadd.xlane.f32.xlu0 %v1903
    %v1905 = vpop.xlane.xlu0 %1904
    %v1906 = vsel %vm1899, %v1769, 0.0
    %1907 = vadd.xlane.f32.xlu0 %v1906
    %v1908 = vpop.xlane.xlu0 %1907
    %v1909 = vsel %vm1899, %v1770, 0.0
    %1910 = vadd.xlane.f32.xlu0 %v1909
    %v1911 = vpop.xlane.xlu0 %1910
    %v1912 = vsel %vm1899, %v1771, 0.0
    %1913 = vadd.xlane.f32.xlu0 %v1912
    %v1914 = vpop.xlane.xlu0 %1913
    %v1915 = vsel %vm1899, %v1772, 0.0
    %1916 = vadd.xlane.f32.xlu0 %v1915
    %v1917 = vpop.xlane.xlu0 %1916
    %v1918 = vmul.f32 %v1902, 0.03125
    %v1919 = vmul.f32 %v1905, 0.03125
    %v1920 = vmul.f32 %v1908, 0.03125
    %v1921 = vmul.f32 %v1911, 0.03125
    %v1922 = vmul.f32 %v1914, 0.03125
    %v1923 = vmul.f32 %v1917, 0.03125
    %v1924 = vsub.f32 %v1767, %v1918
    %v1925 = vsub.f32 %v1768, %v1919
    %v1926 = vsub.f32 %v1769, %v1920
    %v1927 = vsub.f32 %v1770, %v1921
    %v1928 = vsub.f32 %v1771, %v1922
    %v1929 = vsub.f32 %v1772, %v1923
    %v1930 = vmul.f32 %v1924, %v1924
    %v1931 = vmul.f32 %v1925, %v1925
    %v1932 = vmul.f32 %v1926, %v1926
    %v1933 = vmul.f32 %v1927, %v1927
    %v1934 = vmul.f32 %v1928, %v1928
    %v1935 = vmul.f32 %v1929, %v1929
    %v1936 = vsel %vm1899, %v1930, 0.0
    %1937 = vadd.xlane.f32.xlu0 %v1936
    %v1938 = vpop.xlane.xlu0 %1937
    %v1939 = vsel %vm1899, %v1931, 0.0
    %1940 = vadd.xlane.f32.xlu0 %v1939
    %v1941 = vpop.xlane.xlu0 %1940
    %v1942 = vsel %vm1899, %v1932, 0.0
    %1943 = vadd.xlane.f32.xlu0 %v1942
    %v1944 = vpop.xlane.xlu0 %1943
    %v1945 = vsel %vm1899, %v1933, 0.0
    %1946 = vadd.xlane.f32.xlu0 %v1945
    %v1947 = vpop.xlane.xlu0 %1946
    %v1948 = vsel %vm1899, %v1934, 0.0
    %1949 = vadd.xlane.f32.xlu0 %v1948
    %v1950 = vpop.xlane.xlu0 %1949
    %v1951 = vsel %vm1899, %v1935, 0.0
    %1952 = vadd.xlane.f32.xlu0 %v1951
    %v1953 = vpop.xlane.xlu0 %1952
    %v1954 = vmul.f32 %v1938, 0.03125
    %v1955 = vmul.f32 %v1941, 0.03125
    %v1956 = vmul.f32 %v1944, 0.03125
    %v1957 = vmul.f32 %v1947, 0.03125
    %v1958 = vmul.f32 %v1950, 0.03125
    %v1959 = vmul.f32 %v1953, 0.03125
    %v1960 = vadd.f32 %v1954, 1e-12
    %v1961 = vadd.f32 %v1955, 1e-12
    %v1962 = vadd.f32 %v1956, 1e-12
    %v1963 = vadd.f32 %v1957, 1e-12
    %v1964 = vadd.f32 %v1958, 1e-12
    %v1965 = vadd.f32 %v1959, 1e-12
    %v1966 = vrsqrt.pop %v1960
    %v1967 = vrsqrt.pop %v1961
    %v1968 = vrsqrt.pop %v1962
    %v1969 = vrsqrt.pop %v1963
    %v1970 = vrsqrt.pop %v1964
    %v1971 = vrsqrt.pop %v1965
    %v1972 = vmul.f32 %v1924, %v1966
    %v1973 = vmul.f32 %v1925, %v1967
    %v1974 = vmul.f32 %v1926, %v1968
    %v1975 = vmul.f32 %v1927, %v1969
    %v1976 = vmul.f32 %v1928, %v1970
    %v1977 = vmul.f32 %v1929, %v1971
    %v1978 = vsel %vm1899, %v1972, 0.0
    %v1979 = vrot.slane %v1978, 4
    %v1980 = vadd.f32 %v1978, %v1979
    %v1981 = vrot.slane %v1980, 2
    %v1982 = vadd.f32 %v1980, %v1981
    %v1983 = vrot.slane %v1982, 1
    %v1984 = vadd.f32 %v1982, %v1983
    %v1985 = vsel %vm1899, %v1973, 0.0
    %v1986 = vrot.slane %v1985, 4
    %v1987 = vadd.f32 %v1985, %v1986
    %v1988 = vrot.slane %v1987, 2
    %v1989 = vadd.f32 %v1987, %v1988
    %v1990 = vrot.slane %v1989, 1
    %v1991 = vadd.f32 %v1989, %v1990
    %v1992 = vsel %vm1899, %v1974, 0.0
    %v1993 = vrot.slane %v1992, 4
    %v1994 = vadd.f32 %v1992, %v1993
    %v1995 = vrot.slane %v1994, 2
    %v1996 = vadd.f32 %v1994, %v1995
    %v1997 = vrot.slane %v1996, 1
    %v1998 = vadd.f32 %v1996, %v1997
    %v1999 = vsel %vm1899, %v1975, 0.0
    %v2000 = vrot.slane %v1999, 4
    %v2001 = vadd.f32 %v1999, %v2000
    %v2002 = vrot.slane %v2001, 2
    %v2003 = vadd.f32 %v2001, %v2002
    %v2004 = vrot.slane %v2003, 1
    %v2005 = vadd.f32 %v2003, %v2004
    %v2006 = vsel %vm1899, %v1976, 0.0
    %v2007 = vrot.slane %v2006, 4
    %v2008 = vadd.f32 %v2006, %v2007
    %v2009 = vrot.slane %v2008, 2
    %v2010 = vadd.f32 %v2008, %v2009
    %v2011 = vrot.slane %v2010, 1
    %v2012 = vadd.f32 %v2010, %v2011
    %v2013 = vsel %vm1899, %v1977, 0.0
    %v2014 = vrot.slane %v2013, 4
    %v2015 = vadd.f32 %v2013, %v2014
    %v2016 = vrot.slane %v2015, 2
    %v2017 = vadd.f32 %v2015, %v2016
    %v2018 = vrot.slane %v2017, 1
    %v2019 = vadd.f32 %v2017, %v2018
    %v2020 = vmul.f32 %v1984, 0.25
    %v2021 = vmul.f32 %v1991, 0.25
    %v2022 = vmul.f32 %v1998, 0.25
    %v2023 = vmul.f32 %v2005, 0.25
    %v2024 = vmul.f32 %v2012, 0.25
    %v2025 = vmul.f32 %v2019, 0.25
    %v2026 = vld [vmem:[%s2] sm:$0x1]
    %v2027 = vld [vmem:[%s3] sm:$0x1]
    %vm2028 = vcmask 1040384
    %v2029 = vsel %vm2028, %v1893, %v2020
    %v2030 = vsel %vm2028, %v1894, %v2021
    %v2031 = vsel %vm2028, %v1895, %v2022
    %v2032 = vsel %vm2028, %v1896, %v2023
    %v2033 = vsel %vm2028, %v1897, %v2024
    %v2034 = vsel %vm2028, %v1898, %v2025
    %v2036 = vlaneseq
    %v2037 = vshrl.u32 %v2036, 7
    %v2038 = vsub.s32 0, %v2037
    %v2039 = vrot.slane %v2026, %v2038
    %v2041 = vmul.f32 %v2029, %v2039
    %v2042 = vmul.f32 %v2030, %v2039
    %v2043 = vmul.f32 %v2031, %v2039
    %v2044 = vmul.f32 %v2032, %v2039
    %v2045 = vmul.f32 %v2033, %v2039
    %v2046 = vmul.f32 %v2034, %v2039
    %v2048 = vlaneseq
    %v2049 = vshrl.u32 %v2048, 7
    %v2050 = vsub.s32 0, %v2049
    %v2051 = vrot.slane %v2027, %v2050
    %v2053 = vadd.f32 %v2041, %v2051
    %v2054 = vadd.f32 %v2042, %v2051
    %v2055 = vadd.f32 %v2043, %v2051
    %v2056 = vadd.f32 %v2044, %v2051
    %v2057 = vadd.f32 %v2045, %v2051
    %v2058 = vadd.f32 %v2046, %v2051
    %vm2059 = vcmask 254976
    %2060 = vst.msk [vmem:[#allocation7] sm:$0x3] %vm2059, %v2053
    %2061 = vst.msk [vmem:[#allocation7 + $0x2] sm:$0x3] %vm2059, %v2054
    %2062 = vst.msk [vmem:[#allocation7 + $0x4] sm:$0x3] %vm2059, %v2055
    %2063 = vst.msk [vmem:[#allocation7 + $0x6] sm:$0x3] %vm2059, %v2056
    %2064 = vst.msk [vmem:[#allocation7 + $0x8] sm:$0x3] %vm2059, %v2057
    %2065 = vst.msk [vmem:[#allocation7 + $0xa] sm:$0x3] %vm2059, %v2058
    // Predicated region
    $region26: #{tpu_custom_call.1} parent=1 // pred_check
      _
    $region27: #{tpu_custom_call.1} parent=1 // pred_check_branch
      %2067 = sbr.rel (0) target = $region29
    $region28: #{tpu_custom_call.1} parent=1 // pred_region
      %s2069 = ssub.s32 192, 192
      %2070 = vsyncadd [#allocation4], %s2069
      %s2071 = sshll.u32 [#allocation7], 4
      %s2072 = int_to_ptr.vmem [resolvable:$true] %s2071
      %2077 = dma.vmem_to_hbm [thread:$0]  %s2072, 192, %s4, [#allocation4], 32, 32, 2
    $region29: #{tpu_custom_call.1} parent=1 // pred_fallthru
      _
    // Predicated region
    $region30: #{tpu_custom_call.1} parent=1 // pred_check
      _
    $region31: #{tpu_custom_call.1} parent=1 // pred_check_branch
      %2079 = sbr.rel (0) target = $region33
    $region32: #{tpu_custom_call.1} parent=1 // pred_region
      %2080 = dma.done [#allocation4], 192
    $region33: #{tpu_custom_call.1} parent=1 // pred_fallthru
      _
    %2081 = vsyncpa [#allocation3], 1
    %2082 = vsyncpa [#allocation6], 1
    %2083 = vsyncpa [#allocation4], 1

</llo_original>
